<compile_context>
chip_gen: v5e
topology: v5e:2x2
jax: 0.10.0
libtpu: 0.0.40
codegen_flags: <defaults>
</compile_context>

<pallas_src>
import functools

import jax
import jax.numpy as jnp
from jax.experimental import pallas as pl
from jax.experimental.pallas import tpu as pltpu


def _gru_stack_kernel(*refs, num_layers, chunk, batch_block, hidden):
    """All GRU layers over one chunk of `chunk` timesteps for one batch block.

    Ref order (I = inputs, O = outputs, S = scratch):
      I  emb_ref               (1, T*Bb, E) bf16  embedded inputs for this chunk/block
      I  w_ih[l], l=0..L-1     (E,3H)/(H,3H) bf16 gate-fused input weights
      I  b_i[l],  l=0..L-1     (1, 3H)      f32   b_ih with b_hr/b_hz folded in
      I  w_hh[l], l=0..L-1     (H, 3H)      bf16  gate-fused recurrent weights
      I  b_hn[l], l=0..L-1     (1, H)       f32   recurrent bias of the n gate
      O  out_ref               (1, T*Bb, H) f32   last-layer outputs for this chunk
      O  hid_ref               (L, Bb, H)   f32   final hidden state per layer
      S  h_scr                 (L, Bb, H)   f32   carried hidden states (persist over chunks)
      S  act_scr               (T*Bb, H)    f32   current layer's chunk activations
      S  gi_scr                (T*Bb, 3H)   f32   chunk-wide fused input projections
    """
    L, T, Bb, H = num_layers, chunk, batch_block, hidden
    i = 0
    emb_ref = refs[i]; i += 1
    wih_refs = refs[i:i + L]; i += L
    bi_refs = refs[i:i + L]; i += L
    whh_refs = refs[i:i + L]; i += L
    bhn_refs = refs[i:i + L]; i += L
    out_ref, hid_ref, h_scr, act_scr, gi_scr = refs[i:i + 5]

    c = pl.program_id(1)                       # chunk axis (inner, sequential)

    @pl.when(c == 0)
    def _init():
        h_scr[...] = jnp.zeros_like(h_scr)

    for l in range(L):                         # static, unrolled layer loop
        last_layer = (l == L - 1)

        # ---- chunk-wide fused input projection (no h dependence -> hoisted) --
        # One (T*Bb, in) x (in, 3H) MXU dot per layer per chunk; b_ih (+ folded
        # b_hr/b_hz) added once here.
        if l == 0:
            x = emb_ref[0]                                     # (T*Bb, E) bf16
        else:
            x = act_scr[...].astype(jnp.bfloat16)              # (T*Bb, H)
        gi_scr[...] = (jnp.dot(x, wih_refs[l][...],
                               preferred_element_type=jnp.float32)
                       + bi_refs[l][...])

        # b_hn broadcast hoisted once per chunk (JAX does not CSE broadcasts).
        bhn_b = jnp.broadcast_to(bhn_refs[l][...], (Bb, H))
        whh_ref = whh_refs[l]          # keep as a Ref; sliced at point of use

        # ---- sequential recurrence over the chunk ----------------------------
        def step(t, h, whh_ref=whh_ref, bhn_b=bhn_b):
            row = pl.multiple_of(t * Bb, 8)                    # sublane-aligned
            gi = gi_scr[pl.ds(row, Bb), :]                     # (Bb, 3H)
            hb = h.astype(jnp.bfloat16)
            # Single wide (Bb,H) x (H,3H) dot instead of 3 narrow per-gate dots.
            gh = jnp.dot(hb, whh_ref[...],
                         preferred_element_type=jnp.float32)   # (Bb, 3H)
            r = jax.nn.sigmoid(gi[:, :H] + gh[:, :H])
            z = jax.nn.sigmoid(gi[:, H:2 * H] + gh[:, H:2 * H])
            n = jnp.tanh(gi[:, 2 * H:] + r * (gh[:, 2 * H:] + bhn_b))
            h_new = (1.0 - z) * n + z * h
            # Sublane-aligned scratch store; out_ref is written once per chunk
            # below as a single dense slab, never per timestep.
            act_scr[pl.ds(row, Bb), :] = h_new
            return h_new

        h_scr[l] = jax.lax.fori_loop(0, T, step, h_scr[l],
                                     unroll=(True if T <= 8 else 8))

        if last_layer:
            out_ref[0] = act_scr[...]          # one chunk-wide slab store

    @pl.when(c == pl.num_programs(1) - 1)
    def _emit_hidden():
        hid_ref[...] = h_scr[...]


def _vmem_budget_bytes():
    """Per-generation scoped-VMEM budget (v5e/v6e: 128 MiB phys, v7x: 64 MiB)."""
    cap = 64 * 1024 * 1024
    try:
        info = pltpu.get_tpu_info()
        cap = int(getattr(info, "vmem_capacity_bytes", cap) or cap)
    except Exception:
        pass
    return min(int(cap * 3 // 4), 100 * 1024 * 1024)


def _vmem_estimate_bytes(T, Bb, E, H, L):
    """Resident VMEM for one grid step (double-buffered pipeline blocks + scratch)."""
    bf16, f32 = 2, 4
    n = 2 * T * Bb * E * bf16                       # emb block
    n += 2 * T * Bb * H * f32                       # out block
    n += 2 * L * Bb * H * f32                       # hid block
    w_elems = E * 3 * H + (2 * L - 1) * H * 3 * H   # w_ih + w_hh
    n += 2 * w_elems * bf16                         # weights (pipeline double-buffers)
    n += 2 * L * 4 * H * f32                        # biases
    n += (L * Bb * H + T * Bb * H + T * Bb * 3 * H) * f32   # scratch
    return n


def _pick_chunk(S, Bb, E, H, L, budget_bytes):
    """Largest divisor of S (<=1024 steps) whose buffers fit ~80% of the budget."""
    best = 1
    for t in range(1, S + 1):
        if S % t != 0 or t > 1024:
            continue
        if _vmem_estimate_bytes(t, Bb, E, H, L) <= 0.8 * budget_bytes:
            best = t
    return best


def gru_stack(emb, w_ih, b_i, w_hh, b_hn, *, chunk=None, batch_block=None):
    """Fused multi-layer GRU over padded, embedded inputs.

    emb:  (S, Bp, E) bf16, Bp a multiple of 8.
    w_ih: list of L, (E,3H) for layer 0 else (H,3H), bf16, gates r|z|n fused.
    b_i:  list of L, (1,3H) f32 (= b_ih + [b_hr, b_hz, 0]).
    w_hh: list of L, (H,3H) bf16.
    b_hn: list of L, (1,H) f32.
    Returns outputs (S, Bp, H) f32 and hidden (L, Bp, H) f32.
    """
    S, Bp, E = emb.shape
    L = len(w_hh)
    H = w_hh[0].shape[0]
    assert Bp % 8 == 0

    # Batch blocking: sequences are independent -> leading "parallel" grid axis
    # (sharded across v7x's two TensorCores; size-1 no-op on v5e/v6e or tiny B).
    if batch_block is None:
        batch_block = Bp // 2 if (Bp >= 16 and (Bp // 2) % 8 == 0) else Bp
    Bb = batch_block
    assert Bp % Bb == 0 and Bb % 8 == 0
    nb = Bp // Bb

    budget = _vmem_budget_bytes()
    T = chunk if chunk is not None else _pick_chunk(S, Bb, E, H, L, budget)
    assert S % T == 0
    nc = S // T

    # Kernel-friendly layouts: batch-block-major, rows contiguous per chunk.
    emb_k = emb.reshape(S, nb, Bb, E).transpose(1, 0, 2, 3).reshape(nb, S * Bb, E)

    kernel = functools.partial(_gru_stack_kernel, num_layers=L, chunk=T,
                               batch_block=Bb, hidden=H)

    const2 = lambda b, c: (0, 0)
    in_specs = [pl.BlockSpec((1, T * Bb, E), lambda b, c: (b, c, 0))]
    # Constant-index weight/bias blocks.  (When VMEM-tight at large H these can
    # be single-buffered via pipeline_mode=pl.Buffered(1); default kept here.)
    in_specs += [pl.BlockSpec(w.shape, const2) for w in w_ih]
    in_specs += [pl.BlockSpec(b.shape, const2) for b in b_i]
    in_specs += [pl.BlockSpec(w.shape, const2) for w in w_hh]
    in_specs += [pl.BlockSpec(b.shape, const2) for b in b_hn]

    out_shape = (jax.ShapeDtypeStruct((nb, S * Bb, H), jnp.float32),
                 jax.ShapeDtypeStruct((L, Bp, H), jnp.float32))
    out_specs = (pl.BlockSpec((1, T * Bb, H), lambda b, c: (b, c, 0)),
                 pl.BlockSpec((L, Bb, H), lambda b, c: (0, b, 0)))

    out_k, hid = pl.pallas_call(
        kernel,
        out_shape=out_shape,
        grid=(nb, nc),
        in_specs=in_specs,
        out_specs=out_specs,
        scratch_shapes=[pltpu.VMEM((L, Bb, H), jnp.float32),        # hidden carry
                        pltpu.VMEM((T * Bb, H), jnp.float32),       # layer activations
                        pltpu.VMEM((T * Bb, 3 * H), jnp.float32)],  # fused input proj
        compiler_params=pltpu.CompilerParams(
            dimension_semantics=("parallel", "arbitrary"),
            vmem_limit_bytes=int(budget)),
    )(emb_k, *w_ih, *b_i, *w_hh, *b_hn)

    outputs = (out_k.reshape(nb, S, Bb, H)
                    .transpose(1, 0, 2, 3)
                    .reshape(S, Bp, H))
    return outputs, hid


def init_params(key, vocab_size, embed_dim, hidden_size, num_layers):
    """PyTorch-equivalent init; kernel layout = gate-fused (in, 3H) bf16 weights,
    f32 biases with the r/z recurrent biases folded into the input bias."""
    H = hidden_size
    params = {"raw_layers": [], "layers": []}
    k_emb, key = jax.random.split(key)
    params["embedding"] = jax.random.normal(
        k_emb, (vocab_size, embed_dim), dtype=jnp.float32)

    bound = 1.0 / (H ** 0.5)
    for layer in range(num_layers):
        in_dim = embed_dim if layer == 0 else H
        k1, k2, k3, k4, key = jax.random.split(key, 5)
        w_ih = jax.random.uniform(k1, (3 * H, in_dim), minval=-bound, maxval=bound)
        w_hh = jax.random.uniform(k2, (3 * H, H), minval=-bound, maxval=bound)
        b_ih = jax.random.uniform(k3, (3 * H,), minval=-bound, maxval=bound)
        b_hh = jax.random.uniform(k4, (3 * H,), minval=-bound, maxval=bound)
        params["raw_layers"].append(
            {"w_ih": w_ih, "w_hh": w_hh, "b_ih": b_ih, "b_hh": b_hh})
        b_i = b_ih + jnp.concatenate([b_hh[:2 * H], jnp.zeros((H,), jnp.float32)])
        params["layers"].append({
            "w_ih": w_ih.T.astype(jnp.bfloat16),     # (in_dim, 3H), gates r|z|n
            "w_hh": w_hh.T.astype(jnp.bfloat16),     # (H, 3H)
            "b_i": b_i.reshape(1, 3 * H),            # f32, b_hr/b_hz folded in
            "b_hn": b_hh[2 * H:].reshape(1, H),      # f32
        })
    return params


def rnn_encoder_forward(params, src, *, chunk=None):
    """src: (seq_len, batch) int32 -> (outputs (S, B, H), hidden (L, B, H)).
    Matches RNNEncoder.forward in eval mode (dropout == identity)."""
    layers = params["layers"]
    S, B = src.shape
    H = layers[0]["w_hh"].shape[0]

    # Embedding gather (XLA glue).  Dropout == identity.
    # TODO(synk): training-mode dropout (RNG masks on embeddings / between GRU
    # layers) is not implemented; forward matches module.eval().
    embedded = jnp.take(params["embedding"], src, axis=0)          # (S, B, E) f32

    # Pad batch to a multiple of 8 so every sublane access in the kernel is
    # tile-aligned; stream embeddings as bf16 (halves the input DMA).
    Bp = (B + 7) // 8 * 8
    emb = jnp.pad(embedded, ((0, 0), (0, Bp - B), (0, 0))).astype(jnp.bfloat16)

    outputs, hidden = gru_stack(
        emb,
        [lp["w_ih"] for lp in layers],
        [lp["b_i"] for lp in layers],
        [lp["w_hh"] for lp in layers],
        [lp["b_hn"] for lp in layers],
        chunk=chunk)
    return outputs[:, :B, :], hidden[:, :B, :]


def _reference_forward(params, src, *, mimic_bf16=False):
    """Pure-JAX reference in the raw PyTorch GRU formulation.
    mimic_bf16=True additionally mimics the kernel's bf16 matmul-operand casts
    (tight layout/indexing check); False keeps f32 hidden states (loose check)."""
    H = params["raw_layers"][0]["w_hh"].shape[1]
    x = jnp.take(params["embedding"], src, axis=0)
    x = x.astype(jnp.bfloat16).astype(jnp.float32)      # kernel streams bf16 embeddings
    finals = []
    for lp in params["raw_layers"]:
        w_ih = lp["w_ih"].astype(jnp.bfloat16).astype(jnp.float32)   # (3H, in)
        w_hh = lp["w_hh"].astype(jnp.bfloat16).astype(jnp.float32)   # (3H, H)
        b_ih, b_hh = lp["b_ih"], lp["b_hh"]
        if mimic_bf16:
            x = x.astype(jnp.bfloat16).astype(jnp.float32)
        B = x.shape[1]

        def step(h, xt, w_ih=w_ih, w_hh=w_hh, b_ih=b_ih, b_hh=b_hh):
            hm = h.astype(jnp.bfloat16).astype(jnp.float32) if mimic_bf16 else h
            gi = xt @ w_ih.T + b_ih
            gh = hm @ w_hh.T + b_hh
            r = jax.nn.sigmoid(gi[:, :H] + gh[:, :H])
            z = jax.nn.sigmoid(gi[:, H:2 * H] + gh[:, H:2 * H])
            n = jnp.tanh(gi[:, 2 * H:] + r * gh[:, 2 * H:])
            h_new = (1.0 - z) * n + z * h
            return h_new, h_new

        h_last, ys = jax.lax.scan(step, jnp.zeros((B, H), jnp.float32), x)
        x = ys
        finals.append(h_last)
    return x, jnp.stack(finals, axis=0)


if __name__ == "__main__":
    vocab_size = 50
    embed_dim = 32
    hidden_size = 32
    num_layers = 2
    seq_len = 8
    batch = 2

    key = jax.random.PRNGKey(0)
    k_params, k_src = jax.random.split(key)

    params = init_params(k_params, vocab_size, embed_dim, hidden_size, num_layers)
    src = jax.random.randint(k_src, (seq_len, batch), 0, vocab_size, dtype=jnp.int32)

    fwd = jax.jit(rnn_encoder_forward)
    outputs, hidden = fwd(params, src)
    jax.block_until_ready((outputs, hidden))

    assert outputs.shape == (seq_len, batch, hidden_size)
    assert hidden.shape == (num_layers, batch, hidden_size)

    # Internal consistency: last-layer final hidden must equal the last output step.
    assert float(jnp.max(jnp.abs(hidden[-1] - outputs[-1]))) < 1e-5

    # Tight check vs a reference that mimics the kernel's bf16 matmul operands
    # (catches any gate/layout/bias-folding bug), and a loose check vs the pure
    # f32-hidden reference (bounds the bf16 hidden-state recast drift).
    ref_out_b, ref_hid_b = _reference_forward(params, src, mimic_bf16=True)
    assert float(jnp.max(jnp.abs(outputs - ref_out_b))) < 2e-3
    assert float(jnp.max(jnp.abs(hidden - ref_hid_b))) < 2e-3
    ref_out, ref_hid = _reference_forward(params, src)
    assert float(jnp.max(jnp.abs(outputs - ref_out))) < 1e-1
    assert float(jnp.max(jnp.abs(hidden - ref_hid))) < 1e-1

    print("KERNEL_OK")
</pallas_src>

<mosaic_0001>
module attributes {stable_mosaic.version = 11 : i64} {
  func.func @_gru_stack_kernel(%arg0: i32, %arg1: i32, %arg2: memref<1x64x32xbf16, #tpu.memory_space<vmem>>, %arg3: memref<32x96xbf16, #tpu.memory_space<vmem>>, %arg4: memref<32x96xbf16, #tpu.memory_space<vmem>>, %arg5: memref<1x96xf32, #tpu.memory_space<vmem>>, %arg6: memref<1x96xf32, #tpu.memory_space<vmem>>, %arg7: memref<32x96xbf16, #tpu.memory_space<vmem>>, %arg8: memref<32x96xbf16, #tpu.memory_space<vmem>>, %arg9: memref<1x32xf32, #tpu.memory_space<vmem>>, %arg10: memref<1x32xf32, #tpu.memory_space<vmem>>, %arg11: memref<1x64x32xf32, #tpu.memory_space<vmem>>, %arg12: memref<2x8x32xf32, #tpu.memory_space<vmem>>, %arg13: memref<2x8x32xf32, #tpu.memory_space<vmem>>, %arg14: memref<64x32xf32, #tpu.memory_space<vmem>>, %arg15: memref<64x96xf32, #tpu.memory_space<vmem>>) attributes {dimension_semantics = [#tpu.dimension_semantics<parallel>, #tpu.dimension_semantics<arbitrary>], iteration_bounds = array<i64: 1, 1>, scalar_prefetch = 0 : i64, scratch_operands = 3 : i64, tpu.core_type = #tpu.core_type<tc>, window_params = [{transform_indices = @transform_0, window_bounds = array<i64: 1, 64, 32>}, {pipeline_mode = #tpu.pipeline_mode<synchronous>, transform_indices = @transform_1, window_bounds = array<i64: 32, 96>}, {pipeline_mode = #tpu.pipeline_mode<synchronous>, transform_indices = @transform_2, window_bounds = array<i64: 32, 96>}, {pipeline_mode = #tpu.pipeline_mode<synchronous>, transform_indices = @transform_3, window_bounds = array<i64: 1, 96>}, {pipeline_mode = #tpu.pipeline_mode<synchronous>, transform_indices = @transform_4, window_bounds = array<i64: 1, 96>}, {pipeline_mode = #tpu.pipeline_mode<synchronous>, transform_indices = @transform_5, window_bounds = array<i64: 32, 96>}, {pipeline_mode = #tpu.pipeline_mode<synchronous>, transform_indices = @transform_6, window_bounds = array<i64: 32, 96>}, {pipeline_mode = #tpu.pipeline_mode<synchronous>, transform_indices = @transform_7, window_bounds = array<i64: 1, 32>}, {pipeline_mode = #tpu.pipeline_mode<synchronous>, transform_indices = @transform_8, window_bounds = array<i64: 1, 32>}, {transform_indices = @transform_9, window_bounds = array<i64: 1, 64, 32>}, {transform_indices = @transform_10, window_bounds = array<i64: 2, 8, 32>}]} {
    %c0_i32 = arith.constant 0 : i32
    %0 = arith.cmpi eq, %arg1, %c0_i32 : i32
    %1 = arith.extui %0 : i1 to i32
    %c0_i32_0 = arith.constant 0 : i32
    %2 = arith.cmpi ne, %1, %c0_i32_0 : i32
    scf.if %2 {
      %cst_194 = arith.constant 0.000000e+00 : f32
      %618 = vector.broadcast %cst_194 : f32 to vector<2x8x32xf32>
      %c0_195 = arith.constant 0 : index
      %c0_196 = arith.constant 0 : index
      %c0_197 = arith.constant 0 : index
      %619 = vector.load %arg13[%c0_195, %c0_196, %c0_197] : memref<2x8x32xf32, #tpu.memory_space<vmem>>, vector<2x8x32xf32>
      tpu.vector_store %arg13[%c0_195, %c0_196, %c0_197], %618 {strides = array<i32>} : memref<2x8x32xf32, #tpu.memory_space<vmem>>, vector<2x8x32xf32>,
    } else {
    }
    %c0 = arith.constant 0 : index
    %c0_1 = arith.constant 0 : index
    %c0_2 = arith.constant 0 : index
    %3 = vector.load %arg2[%c0, %c0_1, %c0_2] : memref<1x64x32xbf16, #tpu.memory_space<vmem>>, vector<1x64x32xbf16>
    %4 = vector.shape_cast %3 : vector<1x64x32xbf16> to vector<64x32xbf16>
    %c0_3 = arith.constant 0 : index
    %c0_4 = arith.constant 0 : index
    %5 = vector.load %arg3[%c0_3, %c0_4] : memref<32x96xbf16, #tpu.memory_space<vmem>>, vector<32x96xbf16>
    %cst = arith.constant dense<0.000000e+00> : vector<64x96xf32>
    %6 = tpu.matmul %4, %5, %cst {dimension_numbers = #tpu.dot_dimension_numbers<[1], [0], [0], [1], [0, 0, 1, 1], [], []>} : vector<64x32xbf16>, vector<32x96xbf16>, vector<64x96xf32> -> vector<64x96xf32>
    %c0_5 = arith.constant 0 : index
    %c0_6 = arith.constant 0 : index
    %7 = vector.load %arg5[%c0_5, %c0_6] : memref<1x96xf32, #tpu.memory_space<vmem>>, vector<1x96xf32>
    %8 = vector.broadcast %7 : vector<1x96xf32> to vector<64x96xf32>
    %9 = arith.addf %6, %8 : vector<64x96xf32>
    %c0_7 = arith.constant 0 : index
    %c0_8 = arith.constant 0 : index
    %10 = vector.load %arg15[%c0_7, %c0_8] : memref<64x96xf32, #tpu.memory_space<vmem>>, vector<64x96xf32>
    tpu.vector_store %arg15[%c0_7, %c0_8], %9 {strides = array<i32>} : memref<64x96xf32, #tpu.memory_space<vmem>>, vector<64x96xf32>,
    %c0_9 = arith.constant 0 : index
    %c0_10 = arith.constant 0 : index
    %11 = vector.load %arg9[%c0_9, %c0_10] : memref<1x32xf32, #tpu.memory_space<vmem>>, vector<1x32xf32>
    %12 = vector.shape_cast %11 : vector<1x32xf32> to vector<1x32xf32>
    %13 = vector.broadcast %12 : vector<1x32xf32> to vector<8x32xf32>
    %c0_11 = arith.constant 0 : index
    %c0_12 = arith.constant 0 : index
    %c0_13 = arith.constant 0 : index
    %14 = vector.load %arg13[%c0_11, %c0_12, %c0_13] : memref<2x8x32xf32, #tpu.memory_space<vmem>>, vector<1x8x32xf32>
    %15 = vector.shape_cast %14 : vector<1x8x32xf32> to vector<8x32xf32>
    %c0_i32_14 = arith.constant 0 : i32
    %c8_i32 = arith.constant 8 : i32
    %16 = arith.muli %c0_i32_14, %c8_i32 : i32
    %17 = tpu.assume_multiple %16, 8 : i32
    %18 = arith.index_cast %17 : i32 to index
    %c0_15 = arith.constant 0 : index
    %19 = vector.load %arg15[%18, %c0_15] : memref<64x96xf32, #tpu.memory_space<vmem>>, vector<8x96xf32>
    %20 = arith.truncf %15 : vector<8x32xf32> to vector<8x32xbf16>
    %c0_16 = arith.constant 0 : index
    %c0_17 = arith.constant 0 : index
    %21 = vector.load %arg7[%c0_16, %c0_17] : memref<32x96xbf16, #tpu.memory_space<vmem>>, vector<32x96xbf16>
    %cst_18 = arith.constant dense<0.000000e+00> : vector<8x96xf32>
    %22 = tpu.matmul %20, %21, %cst_18 {dimension_numbers = #tpu.dot_dimension_numbers<[1], [0], [0], [1], [0, 0, 1, 1], [], []>} : vector<8x32xbf16>, vector<32x96xbf16>, vector<8x96xf32> -> vector<8x96xf32>
    %23 = vector.extract_strided_slice %19 {offsets = [0, 0], sizes = [8, 32], strides = [1, 1]} : vector<8x96xf32> to vector<8x32xf32>
    %24 = vector.extract_strided_slice %22 {offsets = [0, 0], sizes = [8, 32], strides = [1, 1]} : vector<8x96xf32> to vector<8x32xf32>
    %25 = arith.addf %23, %24 : vector<8x32xf32>
    %26 = arith.negf %25 : vector<8x32xf32>
    %27 = math.exp %26 : vector<8x32xf32>
    %cst_19 = arith.constant 1.000000e+00 : f32
    %28 = vector.broadcast %cst_19 : f32 to vector<8x32xf32>
    %29 = arith.addf %28, %27 : vector<8x32xf32>
    %30 = arith.divf %28, %29 : vector<8x32xf32>
    %31 = vector.extract_strided_slice %19 {offsets = [0, 32], sizes = [8, 32], strides = [1, 1]} : vector<8x96xf32> to vector<8x32xf32>
    %32 = vector.extract_strided_slice %22 {offsets = [0, 32], sizes = [8, 32], strides = [1, 1]} : vector<8x96xf32> to vector<8x32xf32>
    %33 = arith.addf %31, %32 : vector<8x32xf32>
    %34 = arith.negf %33 : vector<8x32xf32>
    %35 = math.exp %34 : vector<8x32xf32>
    %cst_20 = arith.constant 1.000000e+00 : f32
    %36 = vector.broadcast %cst_20 : f32 to vector<8x32xf32>
    %37 = arith.addf %36, %35 : vector<8x32xf32>
    %38 = arith.divf %36, %37 : vector<8x32xf32>
    %39 = vector.extract_strided_slice %19 {offsets = [0, 64], sizes = [8, 32], strides = [1, 1]} : vector<8x96xf32> to vector<8x32xf32>
    %40 = vector.extract_strided_slice %22 {offsets = [0, 64], sizes = [8, 32], strides = [1, 1]} : vector<8x96xf32> to vector<8x32xf32>
    %41 = arith.addf %40, %13 : vector<8x32xf32>
    %42 = arith.mulf %30, %41 : vector<8x32xf32>
    %43 = arith.addf %39, %42 : vector<8x32xf32>
    %44 = math.tanh %43 : vector<8x32xf32>
    %cst_21 = arith.constant 1.000000e+00 : f32
    %45 = vector.broadcast %cst_21 : f32 to vector<8x32xf32>
    %46 = arith.subf %45, %38 : vector<8x32xf32>
    %47 = arith.mulf %46, %44 : vector<8x32xf32>
    %48 = arith.mulf %38, %15 : vector<8x32xf32>
    %49 = arith.addf %47, %48 : vector<8x32xf32>
    %50 = arith.index_cast %17 : i32 to index
    %c0_22 = arith.constant 0 : index
    %51 = vector.load %arg14[%50, %c0_22] : memref<64x32xf32, #tpu.memory_space<vmem>>, vector<8x32xf32>
    tpu.vector_store %arg14[%50, %c0_22], %49 {strides = array<i32>} : memref<64x32xf32, #tpu.memory_space<vmem>>, vector<8x32xf32>,
    %c1_i32 = arith.constant 1 : i32
    %c8_i32_23 = arith.constant 8 : i32
    %52 = arith.muli %c1_i32, %c8_i32_23 : i32
    %53 = tpu.assume_multiple %52, 8 : i32
    %54 = arith.index_cast %53 : i32 to index
    %c0_24 = arith.constant 0 : index
    %55 = vector.load %arg15[%54, %c0_24] : memref<64x96xf32, #tpu.memory_space<vmem>>, vector<8x96xf32>
    %56 = arith.truncf %49 : vector<8x32xf32> to vector<8x32xbf16>
    %c0_25 = arith.constant 0 : index
    %c0_26 = arith.constant 0 : index
    %57 = vector.load %arg7[%c0_25, %c0_26] : memref<32x96xbf16, #tpu.memory_space<vmem>>, vector<32x96xbf16>
    %cst_27 = arith.constant dense<0.000000e+00> : vector<8x96xf32>
    %58 = tpu.matmul %56, %57, %cst_27 {dimension_numbers = #tpu.dot_dimension_numbers<[1], [0], [0], [1], [0, 0, 1, 1], [], []>} : vector<8x32xbf16>, vector<32x96xbf16>, vector<8x96xf32> -> vector<8x96xf32>
    %59 = vector.extract_strided_slice %55 {offsets = [0, 0], sizes = [8, 32], strides = [1, 1]} : vector<8x96xf32> to vector<8x32xf32>
    %60 = vector.extract_strided_slice %58 {offsets = [0, 0], sizes = [8, 32], strides = [1, 1]} : vector<8x96xf32> to vector<8x32xf32>
    %61 = arith.addf %59, %60 : vector<8x32xf32>
    %62 = arith.negf %61 : vector<8x32xf32>
    %63 = math.exp %62 : vector<8x32xf32>
    %cst_28 = arith.constant 1.000000e+00 : f32
    %64 = vector.broadcast %cst_28 : f32 to vector<8x32xf32>
    %65 = arith.addf %64, %63 : vector<8x32xf32>
    %66 = arith.divf %64, %65 : vector<8x32xf32>
    %67 = vector.extract_strided_slice %55 {offsets = [0, 32], sizes = [8, 32], strides = [1, 1]} : vector<8x96xf32> to vector<8x32xf32>
    %68 = vector.extract_strided_slice %58 {offsets = [0, 32], sizes = [8, 32], strides = [1, 1]} : vector<8x96xf32> to vector<8x32xf32>
    %69 = arith.addf %67, %68 : vector<8x32xf32>
    %70 = arith.negf %69 : vector<8x32xf32>
    %71 = math.exp %70 : vector<8x32xf32>
    %cst_29 = arith.constant 1.000000e+00 : f32
    %72 = vector.broadcast %cst_29 : f32 to vector<8x32xf32>
    %73 = arith.addf %72, %71 : vector<8x32xf32>
    %74 = arith.divf %72, %73 : vector<8x32xf32>
    %75 = vector.extract_strided_slice %55 {offsets = [0, 64], sizes = [8, 32], strides = [1, 1]} : vector<8x96xf32> to vector<8x32xf32>
    %76 = vector.extract_strided_slice %58 {offsets = [0, 64], sizes = [8, 32], strides = [1, 1]} : vector<8x96xf32> to vector<8x32xf32>
    %77 = arith.addf %76, %13 : vector<8x32xf32>
    %78 = arith.mulf %66, %77 : vector<8x32xf32>
    %79 = arith.addf %75, %78 : vector<8x32xf32>
    %80 = math.tanh %79 : vector<8x32xf32>
    %cst_30 = arith.constant 1.000000e+00 : f32
    %81 = vector.broadcast %cst_30 : f32 to vector<8x32xf32>
    %82 = arith.subf %81, %74 : vector<8x32xf32>
    %83 = arith.mulf %82, %80 : vector<8x32xf32>
    %84 = arith.mulf %74, %49 : vector<8x32xf32>
    %85 = arith.addf %83, %84 : vector<8x32xf32>
    %86 = arith.index_cast %53 : i32 to index
    %c0_31 = arith.constant 0 : index
    %87 = vector.load %arg14[%86, %c0_31] : memref<64x32xf32, #tpu.memory_space<vmem>>, vector<8x32xf32>
    tpu.vector_store %arg14[%86, %c0_31], %85 {strides = array<i32>} : memref<64x32xf32, #tpu.memory_space<vmem>>, vector<8x32xf32>,
    %c2_i32 = arith.constant 2 : i32
    %c8_i32_32 = arith.constant 8 : i32
    %88 = arith.muli %c2_i32, %c8_i32_32 : i32
    %89 = tpu.assume_multiple %88, 8 : i32
    %90 = arith.index_cast %89 : i32 to index
    %c0_33 = arith.constant 0 : index
    %91 = vector.load %arg15[%90, %c0_33] : memref<64x96xf32, #tpu.memory_space<vmem>>, vector<8x96xf32>
    %92 = arith.truncf %85 : vector<8x32xf32> to vector<8x32xbf16>
    %c0_34 = arith.constant 0 : index
    %c0_35 = arith.constant 0 : index
    %93 = vector.load %arg7[%c0_34, %c0_35] : memref<32x96xbf16, #tpu.memory_space<vmem>>, vector<32x96xbf16>
    %cst_36 = arith.constant dense<0.000000e+00> : vector<8x96xf32>
    %94 = tpu.matmul %92, %93, %cst_36 {dimension_numbers = #tpu.dot_dimension_numbers<[1], [0], [0], [1], [0, 0, 1, 1], [], []>} : vector<8x32xbf16>, vector<32x96xbf16>, vector<8x96xf32> -> vector<8x96xf32>
    %95 = vector.extract_strided_slice %91 {offsets = [0, 0], sizes = [8, 32], strides = [1, 1]} : vector<8x96xf32> to vector<8x32xf32>
    %96 = vector.extract_strided_slice %94 {offsets = [0, 0], sizes = [8, 32], strides = [1, 1]} : vector<8x96xf32> to vector<8x32xf32>
    %97 = arith.addf %95, %96 : vector<8x32xf32>
    %98 = arith.negf %97 : vector<8x32xf32>
    %99 = math.exp %98 : vector<8x32xf32>
    %cst_37 = arith.constant 1.000000e+00 : f32
    %100 = vector.broadcast %cst_37 : f32 to vector<8x32xf32>
    %101 = arith.addf %100, %99 : vector<8x32xf32>
    %102 = arith.divf %100, %101 : vector<8x32xf32>
    %103 = vector.extract_strided_slice %91 {offsets = [0, 32], sizes = [8, 32], strides = [1, 1]} : vector<8x96xf32> to vector<8x32xf32>
    %104 = vector.extract_strided_slice %94 {offsets = [0, 32], sizes = [8, 32], strides = [1, 1]} : vector<8x96xf32> to vector<8x32xf32>
    %105 = arith.addf %103, %104 : vector<8x32xf32>
    %106 = arith.negf %105 : vector<8x32xf32>
    %107 = math.exp %106 : vector<8x32xf32>
    %cst_38 = arith.constant 1.000000e+00 : f32
    %108 = vector.broadcast %cst_38 : f32 to vector<8x32xf32>
    %109 = arith.addf %108, %107 : vector<8x32xf32>
    %110 = arith.divf %108, %109 : vector<8x32xf32>
    %111 = vector.extract_strided_slice %91 {offsets = [0, 64], sizes = [8, 32], strides = [1, 1]} : vector<8x96xf32> to vector<8x32xf32>
    %112 = vector.extract_strided_slice %94 {offsets = [0, 64], sizes = [8, 32], strides = [1, 1]} : vector<8x96xf32> to vector<8x32xf32>
    %113 = arith.addf %112, %13 : vector<8x32xf32>
    %114 = arith.mulf %102, %113 : vector<8x32xf32>
    %115 = arith.addf %111, %114 : vector<8x32xf32>
    %116 = math.tanh %115 : vector<8x32xf32>
    %cst_39 = arith.constant 1.000000e+00 : f32
    %117 = vector.broadcast %cst_39 : f32 to vector<8x32xf32>
    %118 = arith.subf %117, %110 : vector<8x32xf32>
    %119 = arith.mulf %118, %116 : vector<8x32xf32>
    %120 = arith.mulf %110, %85 : vector<8x32xf32>
    %121 = arith.addf %119, %120 : vector<8x32xf32>
    %122 = arith.index_cast %89 : i32 to index
    %c0_40 = arith.constant 0 : index
    %123 = vector.load %arg14[%122, %c0_40] : memref<64x32xf32, #tpu.memory_space<vmem>>, vector<8x32xf32>
    tpu.vector_store %arg14[%122, %c0_40], %121 {strides = array<i32>} : memref<64x32xf32, #tpu.memory_space<vmem>>, vector<8x32xf32>,
    %c3_i32 = arith.constant 3 : i32
    %c8_i32_41 = arith.constant 8 : i32
    %124 = arith.muli %c3_i32, %c8_i32_41 : i32
    %125 = tpu.assume_multiple %124, 8 : i32
    %126 = arith.index_cast %125 : i32 to index
    %c0_42 = arith.constant 0 : index
    %127 = vector.load %arg15[%126, %c0_42] : memref<64x96xf32, #tpu.memory_space<vmem>>, vector<8x96xf32>
    %128 = arith.truncf %121 : vector<8x32xf32> to vector<8x32xbf16>
    %c0_43 = arith.constant 0 : index
    %c0_44 = arith.constant 0 : index
    %129 = vector.load %arg7[%c0_43, %c0_44] : memref<32x96xbf16, #tpu.memory_space<vmem>>, vector<32x96xbf16>
    %cst_45 = arith.constant dense<0.000000e+00> : vector<8x96xf32>
    %130 = tpu.matmul %128, %129, %cst_45 {dimension_numbers = #tpu.dot_dimension_numbers<[1], [0], [0], [1], [0, 0, 1, 1], [], []>} : vector<8x32xbf16>, vector<32x96xbf16>, vector<8x96xf32> -> vector<8x96xf32>
    %131 = vector.extract_strided_slice %127 {offsets = [0, 0], sizes = [8, 32], strides = [1, 1]} : vector<8x96xf32> to vector<8x32xf32>
    %132 = vector.extract_strided_slice %130 {offsets = [0, 0], sizes = [8, 32], strides = [1, 1]} : vector<8x96xf32> to vector<8x32xf32>
    %133 = arith.addf %131, %132 : vector<8x32xf32>
    %134 = arith.negf %133 : vector<8x32xf32>
    %135 = math.exp %134 : vector<8x32xf32>
    %cst_46 = arith.constant 1.000000e+00 : f32
    %136 = vector.broadcast %cst_46 : f32 to vector<8x32xf32>
    %137 = arith.addf %136, %135 : vector<8x32xf32>
    %138 = arith.divf %136, %137 : vector<8x32xf32>
    %139 = vector.extract_strided_slice %127 {offsets = [0, 32], sizes = [8, 32], strides = [1, 1]} : vector<8x96xf32> to vector<8x32xf32>
    %140 = vector.extract_strided_slice %130 {offsets = [0, 32], sizes = [8, 32], strides = [1, 1]} : vector<8x96xf32> to vector<8x32xf32>
    %141 = arith.addf %139, %140 : vector<8x32xf32>
    %142 = arith.negf %141 : vector<8x32xf32>
    %143 = math.exp %142 : vector<8x32xf32>
    %cst_47 = arith.constant 1.000000e+00 : f32
    %144 = vector.broadcast %cst_47 : f32 to vector<8x32xf32>
    %145 = arith.addf %144, %143 : vector<8x32xf32>
    %146 = arith.divf %144, %145 : vector<8x32xf32>
    %147 = vector.extract_strided_slice %127 {offsets = [0, 64], sizes = [8, 32], strides = [1, 1]} : vector<8x96xf32> to vector<8x32xf32>
    %148 = vector.extract_strided_slice %130 {offsets = [0, 64], sizes = [8, 32], strides = [1, 1]} : vector<8x96xf32> to vector<8x32xf32>
    %149 = arith.addf %148, %13 : vector<8x32xf32>
    %150 = arith.mulf %138, %149 : vector<8x32xf32>
    %151 = arith.addf %147, %150 : vector<8x32xf32>
    %152 = math.tanh %151 : vector<8x32xf32>
    %cst_48 = arith.constant 1.000000e+00 : f32
    %153 = vector.broadcast %cst_48 : f32 to vector<8x32xf32>
    %154 = arith.subf %153, %146 : vector<8x32xf32>
    %155 = arith.mulf %154, %152 : vector<8x32xf32>
    %156 = arith.mulf %146, %121 : vector<8x32xf32>
    %157 = arith.addf %155, %156 : vector<8x32xf32>
    %158 = arith.index_cast %125 : i32 to index
    %c0_49 = arith.constant 0 : index
    %159 = vector.load %arg14[%158, %c0_49] : memref<64x32xf32, #tpu.memory_space<vmem>>, vector<8x32xf32>
    tpu.vector_store %arg14[%158, %c0_49], %157 {strides = array<i32>} : memref<64x32xf32, #tpu.memory_space<vmem>>, vector<8x32xf32>,
    %c4_i32 = arith.constant 4 : i32
    %c8_i32_50 = arith.constant 8 : i32
    %160 = arith.muli %c4_i32, %c8_i32_50 : i32
    %161 = tpu.assume_multiple %160, 8 : i32
    %162 = arith.index_cast %161 : i32 to index
    %c0_51 = arith.constant 0 : index
    %163 = vector.load %arg15[%162, %c0_51] : memref<64x96xf32, #tpu.memory_space<vmem>>, vector<8x96xf32>
    %164 = arith.truncf %157 : vector<8x32xf32> to vector<8x32xbf16>
    %c0_52 = arith.constant 0 : index
    %c0_53 = arith.constant 0 : index
    %165 = vector.load %arg7[%c0_52, %c0_53] : memref<32x96xbf16, #tpu.memory_space<vmem>>, vector<32x96xbf16>
    %cst_54 = arith.constant dense<0.000000e+00> : vector<8x96xf32>
    %166 = tpu.matmul %164, %165, %cst_54 {dimension_numbers = #tpu.dot_dimension_numbers<[1], [0], [0], [1], [0, 0, 1, 1], [], []>} : vector<8x32xbf16>, vector<32x96xbf16>, vector<8x96xf32> -> vector<8x96xf32>
    %167 = vector.extract_strided_slice %163 {offsets = [0, 0], sizes = [8, 32], strides = [1, 1]} : vector<8x96xf32> to vector<8x32xf32>
    %168 = vector.extract_strided_slice %166 {offsets = [0, 0], sizes = [8, 32], strides = [1, 1]} : vector<8x96xf32> to vector<8x32xf32>
    %169 = arith.addf %167, %168 : vector<8x32xf32>
    %170 = arith.negf %169 : vector<8x32xf32>
    %171 = math.exp %170 : vector<8x32xf32>
    %cst_55 = arith.constant 1.000000e+00 : f32
    %172 = vector.broadcast %cst_55 : f32 to vector<8x32xf32>
    %173 = arith.addf %172, %171 : vector<8x32xf32>
    %174 = arith.divf %172, %173 : vector<8x32xf32>
    %175 = vector.extract_strided_slice %163 {offsets = [0, 32], sizes = [8, 32], strides = [1, 1]} : vector<8x96xf32> to vector<8x32xf32>
    %176 = vector.extract_strided_slice %166 {offsets = [0, 32], sizes = [8, 32], strides = [1, 1]} : vector<8x96xf32> to vector<8x32xf32>
    %177 = arith.addf %175, %176 : vector<8x32xf32>
    %178 = arith.negf %177 : vector<8x32xf32>
    %179 = math.exp %178 : vector<8x32xf32>
    %cst_56 = arith.constant 1.000000e+00 : f32
    %180 = vector.broadcast %cst_56 : f32 to vector<8x32xf32>
    %181 = arith.addf %180, %179 : vector<8x32xf32>
    %182 = arith.divf %180, %181 : vector<8x32xf32>
    %183 = vector.extract_strided_slice %163 {offsets = [0, 64], sizes = [8, 32], strides = [1, 1]} : vector<8x96xf32> to vector<8x32xf32>
    %184 = vector.extract_strided_slice %166 {offsets = [0, 64], sizes = [8, 32], strides = [1, 1]} : vector<8x96xf32> to vector<8x32xf32>
    %185 = arith.addf %184, %13 : vector<8x32xf32>
    %186 = arith.mulf %174, %185 : vector<8x32xf32>
    %187 = arith.addf %183, %186 : vector<8x32xf32>
    %188 = math.tanh %187 : vector<8x32xf32>
    %cst_57 = arith.constant 1.000000e+00 : f32
    %189 = vector.broadcast %cst_57 : f32 to vector<8x32xf32>
    %190 = arith.subf %189, %182 : vector<8x32xf32>
    %191 = arith.mulf %190, %188 : vector<8x32xf32>
    %192 = arith.mulf %182, %157 : vector<8x32xf32>
    %193 = arith.addf %191, %192 : vector<8x32xf32>
    %194 = arith.index_cast %161 : i32 to index
    %c0_58 = arith.constant 0 : index
    %195 = vector.load %arg14[%194, %c0_58] : memref<64x32xf32, #tpu.memory_space<vmem>>, vector<8x32xf32>
    tpu.vector_store %arg14[%194, %c0_58], %193 {strides = array<i32>} : memref<64x32xf32, #tpu.memory_space<vmem>>, vector<8x32xf32>,
    %c5_i32 = arith.constant 5 : i32
    %c8_i32_59 = arith.constant 8 : i32
    %196 = arith.muli %c5_i32, %c8_i32_59 : i32
    %197 = tpu.assume_multiple %196, 8 : i32
    %198 = arith.index_cast %197 : i32 to index
    %c0_60 = arith.constant 0 : index
    %199 = vector.load %arg15[%198, %c0_60] : memref<64x96xf32, #tpu.memory_space<vmem>>, vector<8x96xf32>
    %200 = arith.truncf %193 : vector<8x32xf32> to vector<8x32xbf16>
    %c0_61 = arith.constant 0 : index
    %c0_62 = arith.constant 0 : index
    %201 = vector.load %arg7[%c0_61, %c0_62] : memref<32x96xbf16, #tpu.memory_space<vmem>>, vector<32x96xbf16>
    %cst_63 = arith.constant dense<0.000000e+00> : vector<8x96xf32>
    %202 = tpu.matmul %200, %201, %cst_63 {dimension_numbers = #tpu.dot_dimension_numbers<[1], [0], [0], [1], [0, 0, 1, 1], [], []>} : vector<8x32xbf16>, vector<32x96xbf16>, vector<8x96xf32> -> vector<8x96xf32>
    %203 = vector.extract_strided_slice %199 {offsets = [0, 0], sizes = [8, 32], strides = [1, 1]} : vector<8x96xf32> to vector<8x32xf32>
    %204 = vector.extract_strided_slice %202 {offsets = [0, 0], sizes = [8, 32], strides = [1, 1]} : vector<8x96xf32> to vector<8x32xf32>
    %205 = arith.addf %203, %204 : vector<8x32xf32>
    %206 = arith.negf %205 : vector<8x32xf32>
    %207 = math.exp %206 : vector<8x32xf32>
    %cst_64 = arith.constant 1.000000e+00 : f32
    %208 = vector.broadcast %cst_64 : f32 to vector<8x32xf32>
    %209 = arith.addf %208, %207 : vector<8x32xf32>
    %210 = arith.divf %208, %209 : vector<8x32xf32>
    %211 = vector.extract_strided_slice %199 {offsets = [0, 32], sizes = [8, 32], strides = [1, 1]} : vector<8x96xf32> to vector<8x32xf32>
    %212 = vector.extract_strided_slice %202 {offsets = [0, 32], sizes = [8, 32], strides = [1, 1]} : vector<8x96xf32> to vector<8x32xf32>
    %213 = arith.addf %211, %212 : vector<8x32xf32>
    %214 = arith.negf %213 : vector<8x32xf32>
    %215 = math.exp %214 : vector<8x32xf32>
    %cst_65 = arith.constant 1.000000e+00 : f32
    %216 = vector.broadcast %cst_65 : f32 to vector<8x32xf32>
    %217 = arith.addf %216, %215 : vector<8x32xf32>
    %218 = arith.divf %216, %217 : vector<8x32xf32>
    %219 = vector.extract_strided_slice %199 {offsets = [0, 64], sizes = [8, 32], strides = [1, 1]} : vector<8x96xf32> to vector<8x32xf32>
    %220 = vector.extract_strided_slice %202 {offsets = [0, 64], sizes = [8, 32], strides = [1, 1]} : vector<8x96xf32> to vector<8x32xf32>
    %221 = arith.addf %220, %13 : vector<8x32xf32>
    %222 = arith.mulf %210, %221 : vector<8x32xf32>
    %223 = arith.addf %219, %222 : vector<8x32xf32>
    %224 = math.tanh %223 : vector<8x32xf32>
    %cst_66 = arith.constant 1.000000e+00 : f32
    %225 = vector.broadcast %cst_66 : f32 to vector<8x32xf32>
    %226 = arith.subf %225, %218 : vector<8x32xf32>
    %227 = arith.mulf %226, %224 : vector<8x32xf32>
    %228 = arith.mulf %218, %193 : vector<8x32xf32>
    %229 = arith.addf %227, %228 : vector<8x32xf32>
    %230 = arith.index_cast %197 : i32 to index
    %c0_67 = arith.constant 0 : index
    %231 = vector.load %arg14[%230, %c0_67] : memref<64x32xf32, #tpu.memory_space<vmem>>, vector<8x32xf32>
    tpu.vector_store %arg14[%230, %c0_67], %229 {strides = array<i32>} : memref<64x32xf32, #tpu.memory_space<vmem>>, vector<8x32xf32>,
    %c6_i32 = arith.constant 6 : i32
    %c8_i32_68 = arith.constant 8 : i32
    %232 = arith.muli %c6_i32, %c8_i32_68 : i32
    %233 = tpu.assume_multiple %232, 8 : i32
    %234 = arith.index_cast %233 : i32 to index
    %c0_69 = arith.constant 0 : index
    %235 = vector.load %arg15[%234, %c0_69] : memref<64x96xf32, #tpu.memory_space<vmem>>, vector<8x96xf32>
    %236 = arith.truncf %229 : vector<8x32xf32> to vector<8x32xbf16>
    %c0_70 = arith.constant 0 : index
    %c0_71 = arith.constant 0 : index
    %237 = vector.load %arg7[%c0_70, %c0_71] : memref<32x96xbf16, #tpu.memory_space<vmem>>, vector<32x96xbf16>
    %cst_72 = arith.constant dense<0.000000e+00> : vector<8x96xf32>
    %238 = tpu.matmul %236, %237, %cst_72 {dimension_numbers = #tpu.dot_dimension_numbers<[1], [0], [0], [1], [0, 0, 1, 1], [], []>} : vector<8x32xbf16>, vector<32x96xbf16>, vector<8x96xf32> -> vector<8x96xf32>
    %239 = vector.extract_strided_slice %235 {offsets = [0, 0], sizes = [8, 32], strides = [1, 1]} : vector<8x96xf32> to vector<8x32xf32>
    %240 = vector.extract_strided_slice %238 {offsets = [0, 0], sizes = [8, 32], strides = [1, 1]} : vector<8x96xf32> to vector<8x32xf32>
    %241 = arith.addf %239, %240 : vector<8x32xf32>
    %242 = arith.negf %241 : vector<8x32xf32>
    %243 = math.exp %242 : vector<8x32xf32>
    %cst_73 = arith.constant 1.000000e+00 : f32
    %244 = vector.broadcast %cst_73 : f32 to vector<8x32xf32>
    %245 = arith.addf %244, %243 : vector<8x32xf32>
    %246 = arith.divf %244, %245 : vector<8x32xf32>
    %247 = vector.extract_strided_slice %235 {offsets = [0, 32], sizes = [8, 32], strides = [1, 1]} : vector<8x96xf32> to vector<8x32xf32>
    %248 = vector.extract_strided_slice %238 {offsets = [0, 32], sizes = [8, 32], strides = [1, 1]} : vector<8x96xf32> to vector<8x32xf32>
    %249 = arith.addf %247, %248 : vector<8x32xf32>
    %250 = arith.negf %249 : vector<8x32xf32>
    %251 = math.exp %250 : vector<8x32xf32>
    %cst_74 = arith.constant 1.000000e+00 : f32
    %252 = vector.broadcast %cst_74 : f32 to vector<8x32xf32>
    %253 = arith.addf %252, %251 : vector<8x32xf32>
    %254 = arith.divf %252, %253 : vector<8x32xf32>
    %255 = vector.extract_strided_slice %235 {offsets = [0, 64], sizes = [8, 32], strides = [1, 1]} : vector<8x96xf32> to vector<8x32xf32>
    %256 = vector.extract_strided_slice %238 {offsets = [0, 64], sizes = [8, 32], strides = [1, 1]} : vector<8x96xf32> to vector<8x32xf32>
    %257 = arith.addf %256, %13 : vector<8x32xf32>
    %258 = arith.mulf %246, %257 : vector<8x32xf32>
    %259 = arith.addf %255, %258 : vector<8x32xf32>
    %260 = math.tanh %259 : vector<8x32xf32>
    %cst_75 = arith.constant 1.000000e+00 : f32
    %261 = vector.broadcast %cst_75 : f32 to vector<8x32xf32>
    %262 = arith.subf %261, %254 : vector<8x32xf32>
    %263 = arith.mulf %262, %260 : vector<8x32xf32>
    %264 = arith.mulf %254, %229 : vector<8x32xf32>
    %265 = arith.addf %263, %264 : vector<8x32xf32>
    %266 = arith.index_cast %233 : i32 to index
    %c0_76 = arith.constant 0 : index
    %267 = vector.load %arg14[%266, %c0_76] : memref<64x32xf32, #tpu.memory_space<vmem>>, vector<8x32xf32>
    tpu.vector_store %arg14[%266, %c0_76], %265 {strides = array<i32>} : memref<64x32xf32, #tpu.memory_space<vmem>>, vector<8x32xf32>,
    %c7_i32 = arith.constant 7 : i32
    %c8_i32_77 = arith.constant 8 : i32
    %268 = arith.muli %c7_i32, %c8_i32_77 : i32
    %269 = tpu.assume_multiple %268, 8 : i32
    %270 = arith.index_cast %269 : i32 to index
    %c0_78 = arith.constant 0 : index
    %271 = vector.load %arg15[%270, %c0_78] : memref<64x96xf32, #tpu.memory_space<vmem>>, vector<8x96xf32>
    %272 = arith.truncf %265 : vector<8x32xf32> to vector<8x32xbf16>
    %c0_79 = arith.constant 0 : index
    %c0_80 = arith.constant 0 : index
    %273 = vector.load %arg7[%c0_79, %c0_80] : memref<32x96xbf16, #tpu.memory_space<vmem>>, vector<32x96xbf16>
    %cst_81 = arith.constant dense<0.000000e+00> : vector<8x96xf32>
    %274 = tpu.matmul %272, %273, %cst_81 {dimension_numbers = #tpu.dot_dimension_numbers<[1], [0], [0], [1], [0, 0, 1, 1], [], []>} : vector<8x32xbf16>, vector<32x96xbf16>, vector<8x96xf32> -> vector<8x96xf32>
    %275 = vector.extract_strided_slice %271 {offsets = [0, 0], sizes = [8, 32], strides = [1, 1]} : vector<8x96xf32> to vector<8x32xf32>
    %276 = vector.extract_strided_slice %274 {offsets = [0, 0], sizes = [8, 32], strides = [1, 1]} : vector<8x96xf32> to vector<8x32xf32>
    %277 = arith.addf %275, %276 : vector<8x32xf32>
    %278 = arith.negf %277 : vector<8x32xf32>
    %279 = math.exp %278 : vector<8x32xf32>
    %cst_82 = arith.constant 1.000000e+00 : f32
    %280 = vector.broadcast %cst_82 : f32 to vector<8x32xf32>
    %281 = arith.addf %280, %279 : vector<8x32xf32>
    %282 = arith.divf %280, %281 : vector<8x32xf32>
    %283 = vector.extract_strided_slice %271 {offsets = [0, 32], sizes = [8, 32], strides = [1, 1]} : vector<8x96xf32> to vector<8x32xf32>
    %284 = vector.extract_strided_slice %274 {offsets = [0, 32], sizes = [8, 32], strides = [1, 1]} : vector<8x96xf32> to vector<8x32xf32>
    %285 = arith.addf %283, %284 : vector<8x32xf32>
    %286 = arith.negf %285 : vector<8x32xf32>
    %287 = math.exp %286 : vector<8x32xf32>
    %cst_83 = arith.constant 1.000000e+00 : f32
    %288 = vector.broadcast %cst_83 : f32 to vector<8x32xf32>
    %289 = arith.addf %288, %287 : vector<8x32xf32>
    %290 = arith.divf %288, %289 : vector<8x32xf32>
    %291 = vector.extract_strided_slice %271 {offsets = [0, 64], sizes = [8, 32], strides = [1, 1]} : vector<8x96xf32> to vector<8x32xf32>
    %292 = vector.extract_strided_slice %274 {offsets = [0, 64], sizes = [8, 32], strides = [1, 1]} : vector<8x96xf32> to vector<8x32xf32>
    %293 = arith.addf %292, %13 : vector<8x32xf32>
    %294 = arith.mulf %282, %293 : vector<8x32xf32>
    %295 = arith.addf %291, %294 : vector<8x32xf32>
    %296 = math.tanh %295 : vector<8x32xf32>
    %cst_84 = arith.constant 1.000000e+00 : f32
    %297 = vector.broadcast %cst_84 : f32 to vector<8x32xf32>
    %298 = arith.subf %297, %290 : vector<8x32xf32>
    %299 = arith.mulf %298, %296 : vector<8x32xf32>
    %300 = arith.mulf %290, %265 : vector<8x32xf32>
    %301 = arith.addf %299, %300 : vector<8x32xf32>
    %302 = arith.index_cast %269 : i32 to index
    %c0_85 = arith.constant 0 : index
    %303 = vector.load %arg14[%302, %c0_85] : memref<64x32xf32, #tpu.memory_space<vmem>>, vector<8x32xf32>
    tpu.vector_store %arg14[%302, %c0_85], %301 {strides = array<i32>} : memref<64x32xf32, #tpu.memory_space<vmem>>, vector<8x32xf32>,
    %c8_i32_86 = arith.constant 8 : i32
    %c0_87 = arith.constant 0 : index
    %c0_88 = arith.constant 0 : index
    %c0_89 = arith.constant 0 : index
    %304 = vector.load %arg13[%c0_87, %c0_88, %c0_89] : memref<2x8x32xf32, #tpu.memory_space<vmem>>, vector<1x8x32xf32>
    %305 = vector.shape_cast %304 : vector<1x8x32xf32> to vector<8x32xf32>
    %306 = vector.shape_cast %301 : vector<8x32xf32> to vector<1x8x32xf32>
    tpu.vector_store %arg13[%c0_87, %c0_88, %c0_89], %306 {strides = array<i32>} : memref<2x8x32xf32, #tpu.memory_space<vmem>>, vector<1x8x32xf32>,
    %c0_90 = arith.constant 0 : index
    %c0_91 = arith.constant 0 : index
    %307 = vector.load %arg14[%c0_90, %c0_91] : memref<64x32xf32, #tpu.memory_space<vmem>>, vector<64x32xf32>
    %308 = arith.truncf %307 : vector<64x32xf32> to vector<64x32xbf16>
    %c0_92 = arith.constant 0 : index
    %c0_93 = arith.constant 0 : index
    %309 = vector.load %arg4[%c0_92, %c0_93] : memref<32x96xbf16, #tpu.memory_space<vmem>>, vector<32x96xbf16>
    %cst_94 = arith.constant dense<0.000000e+00> : vector<64x96xf32>
    %310 = tpu.matmul %308, %309, %cst_94 {dimension_numbers = #tpu.dot_dimension_numbers<[1], [0], [0], [1], [0, 0, 1, 1], [], []>} : vector<64x32xbf16>, vector<32x96xbf16>, vector<64x96xf32> -> vector<64x96xf32>
    %c0_95 = arith.constant 0 : index
    %c0_96 = arith.constant 0 : index
    %311 = vector.load %arg6[%c0_95, %c0_96] : memref<1x96xf32, #tpu.memory_space<vmem>>, vector<1x96xf32>
    %312 = vector.broadcast %311 : vector<1x96xf32> to vector<64x96xf32>
    %313 = arith.addf %310, %312 : vector<64x96xf32>
    %c0_97 = arith.constant 0 : index
    %c0_98 = arith.constant 0 : index
    %314 = vector.load %arg15[%c0_97, %c0_98] : memref<64x96xf32, #tpu.memory_space<vmem>>, vector<64x96xf32>
    tpu.vector_store %arg15[%c0_97, %c0_98], %313 {strides = array<i32>} : memref<64x96xf32, #tpu.memory_space<vmem>>, vector<64x96xf32>,
    %c0_99 = arith.constant 0 : index
    %c0_100 = arith.constant 0 : index
    %315 = vector.load %arg10[%c0_99, %c0_100] : memref<1x32xf32, #tpu.memory_space<vmem>>, vector<1x32xf32>
    %316 = vector.shape_cast %315 : vector<1x32xf32> to vector<1x32xf32>
    %317 = vector.broadcast %316 : vector<1x32xf32> to vector<8x32xf32>
    %c1 = arith.constant 1 : index
    %c0_101 = arith.constant 0 : index
    %c0_102 = arith.constant 0 : index
    %318 = vector.load %arg13[%c1, %c0_101, %c0_102] : memref<2x8x32xf32, #tpu.memory_space<vmem>>, vector<1x8x32xf32>
    %319 = vector.shape_cast %318 : vector<1x8x32xf32> to vector<8x32xf32>
    %c0_i32_103 = arith.constant 0 : i32
    %c8_i32_104 = arith.constant 8 : i32
    %320 = arith.muli %c0_i32_103, %c8_i32_104 : i32
    %321 = tpu.assume_multiple %320, 8 : i32
    %322 = arith.index_cast %321 : i32 to index
    %c0_105 = arith.constant 0 : index
    %323 = vector.load %arg15[%322, %c0_105] : memref<64x96xf32, #tpu.memory_space<vmem>>, vector<8x96xf32>
    %324 = arith.truncf %319 : vector<8x32xf32> to vector<8x32xbf16>
    %c0_106 = arith.constant 0 : index
    %c0_107 = arith.constant 0 : index
    %325 = vector.load %arg8[%c0_106, %c0_107] : memref<32x96xbf16, #tpu.memory_space<vmem>>, vector<32x96xbf16>
    %cst_108 = arith.constant dense<0.000000e+00> : vector<8x96xf32>
    %326 = tpu.matmul %324, %325, %cst_108 {dimension_numbers = #tpu.dot_dimension_numbers<[1], [0], [0], [1], [0, 0, 1, 1], [], []>} : vector<8x32xbf16>, vector<32x96xbf16>, vector<8x96xf32> -> vector<8x96xf32>
    %327 = vector.extract_strided_slice %323 {offsets = [0, 0], sizes = [8, 32], strides = [1, 1]} : vector<8x96xf32> to vector<8x32xf32>
    %328 = vector.extract_strided_slice %326 {offsets = [0, 0], sizes = [8, 32], strides = [1, 1]} : vector<8x96xf32> to vector<8x32xf32>
    %329 = arith.addf %327, %328 : vector<8x32xf32>
    %330 = arith.negf %329 : vector<8x32xf32>
    %331 = math.exp %330 : vector<8x32xf32>
    %cst_109 = arith.constant 1.000000e+00 : f32
    %332 = vector.broadcast %cst_109 : f32 to vector<8x32xf32>
    %333 = arith.addf %332, %331 : vector<8x32xf32>
    %334 = arith.divf %332, %333 : vector<8x32xf32>
    %335 = vector.extract_strided_slice %323 {offsets = [0, 32], sizes = [8, 32], strides = [1, 1]} : vector<8x96xf32> to vector<8x32xf32>
    %336 = vector.extract_strided_slice %326 {offsets = [0, 32], sizes = [8, 32], strides = [1, 1]} : vector<8x96xf32> to vector<8x32xf32>
    %337 = arith.addf %335, %336 : vector<8x32xf32>
    %338 = arith.negf %337 : vector<8x32xf32>
    %339 = math.exp %338 : vector<8x32xf32>
    %cst_110 = arith.constant 1.000000e+00 : f32
    %340 = vector.broadcast %cst_110 : f32 to vector<8x32xf32>
    %341 = arith.addf %340, %339 : vector<8x32xf32>
    %342 = arith.divf %340, %341 : vector<8x32xf32>
    %343 = vector.extract_strided_slice %323 {offsets = [0, 64], sizes = [8, 32], strides = [1, 1]} : vector<8x96xf32> to vector<8x32xf32>
    %344 = vector.extract_strided_slice %326 {offsets = [0, 64], sizes = [8, 32], strides = [1, 1]} : vector<8x96xf32> to vector<8x32xf32>
    %345 = arith.addf %344, %317 : vector<8x32xf32>
    %346 = arith.mulf %334, %345 : vector<8x32xf32>
    %347 = arith.addf %343, %346 : vector<8x32xf32>
    %348 = math.tanh %347 : vector<8x32xf32>
    %cst_111 = arith.constant 1.000000e+00 : f32
    %349 = vector.broadcast %cst_111 : f32 to vector<8x32xf32>
    %350 = arith.subf %349, %342 : vector<8x32xf32>
    %351 = arith.mulf %350, %348 : vector<8x32xf32>
    %352 = arith.mulf %342, %319 : vector<8x32xf32>
    %353 = arith.addf %351, %352 : vector<8x32xf32>
    %354 = arith.index_cast %321 : i32 to index
    %c0_112 = arith.constant 0 : index
    %355 = vector.load %arg14[%354, %c0_112] : memref<64x32xf32, #tpu.memory_space<vmem>>, vector<8x32xf32>
    tpu.vector_store %arg14[%354, %c0_112], %353 {strides = array<i32>} : memref<64x32xf32, #tpu.memory_space<vmem>>, vector<8x32xf32>,
    %c1_i32_113 = arith.constant 1 : i32
    %c8_i32_114 = arith.constant 8 : i32
    %356 = arith.muli %c1_i32_113, %c8_i32_114 : i32
    %357 = tpu.assume_multiple %356, 8 : i32
    %358 = arith.index_cast %357 : i32 to index
    %c0_115 = arith.constant 0 : index
    %359 = vector.load %arg15[%358, %c0_115] : memref<64x96xf32, #tpu.memory_space<vmem>>, vector<8x96xf32>
    %360 = arith.truncf %353 : vector<8x32xf32> to vector<8x32xbf16>
    %c0_116 = arith.constant 0 : index
    %c0_117 = arith.constant 0 : index
    %361 = vector.load %arg8[%c0_116, %c0_117] : memref<32x96xbf16, #tpu.memory_space<vmem>>, vector<32x96xbf16>
    %cst_118 = arith.constant dense<0.000000e+00> : vector<8x96xf32>
    %362 = tpu.matmul %360, %361, %cst_118 {dimension_numbers = #tpu.dot_dimension_numbers<[1], [0], [0], [1], [0, 0, 1, 1], [], []>} : vector<8x32xbf16>, vector<32x96xbf16>, vector<8x96xf32> -> vector<8x96xf32>
    %363 = vector.extract_strided_slice %359 {offsets = [0, 0], sizes = [8, 32], strides = [1, 1]} : vector<8x96xf32> to vector<8x32xf32>
    %364 = vector.extract_strided_slice %362 {offsets = [0, 0], sizes = [8, 32], strides = [1, 1]} : vector<8x96xf32> to vector<8x32xf32>
    %365 = arith.addf %363, %364 : vector<8x32xf32>
    %366 = arith.negf %365 : vector<8x32xf32>
    %367 = math.exp %366 : vector<8x32xf32>
    %cst_119 = arith.constant 1.000000e+00 : f32
    %368 = vector.broadcast %cst_119 : f32 to vector<8x32xf32>
    %369 = arith.addf %368, %367 : vector<8x32xf32>
    %370 = arith.divf %368, %369 : vector<8x32xf32>
    %371 = vector.extract_strided_slice %359 {offsets = [0, 32], sizes = [8, 32], strides = [1, 1]} : vector<8x96xf32> to vector<8x32xf32>
    %372 = vector.extract_strided_slice %362 {offsets = [0, 32], sizes = [8, 32], strides = [1, 1]} : vector<8x96xf32> to vector<8x32xf32>
    %373 = arith.addf %371, %372 : vector<8x32xf32>
    %374 = arith.negf %373 : vector<8x32xf32>
    %375 = math.exp %374 : vector<8x32xf32>
    %cst_120 = arith.constant 1.000000e+00 : f32
    %376 = vector.broadcast %cst_120 : f32 to vector<8x32xf32>
    %377 = arith.addf %376, %375 : vector<8x32xf32>
    %378 = arith.divf %376, %377 : vector<8x32xf32>
    %379 = vector.extract_strided_slice %359 {offsets = [0, 64], sizes = [8, 32], strides = [1, 1]} : vector<8x96xf32> to vector<8x32xf32>
    %380 = vector.extract_strided_slice %362 {offsets = [0, 64], sizes = [8, 32], strides = [1, 1]} : vector<8x96xf32> to vector<8x32xf32>
    %381 = arith.addf %380, %317 : vector<8x32xf32>
    %382 = arith.mulf %370, %381 : vector<8x32xf32>
    %383 = arith.addf %379, %382 : vector<8x32xf32>
    %384 = math.tanh %383 : vector<8x32xf32>
    %cst_121 = arith.constant 1.000000e+00 : f32
    %385 = vector.broadcast %cst_121 : f32 to vector<8x32xf32>
    %386 = arith.subf %385, %378 : vector<8x32xf32>
    %387 = arith.mulf %386, %384 : vector<8x32xf32>
    %388 = arith.mulf %378, %353 : vector<8x32xf32>
    %389 = arith.addf %387, %388 : vector<8x32xf32>
    %390 = arith.index_cast %357 : i32 to index
    %c0_122 = arith.constant 0 : index
    %391 = vector.load %arg14[%390, %c0_122] : memref<64x32xf32, #tpu.memory_space<vmem>>, vector<8x32xf32>
    tpu.vector_store %arg14[%390, %c0_122], %389 {strides = array<i32>} : memref<64x32xf32, #tpu.memory_space<vmem>>, vector<8x32xf32>,
    %c2_i32_123 = arith.constant 2 : i32
    %c8_i32_124 = arith.constant 8 : i32
    %392 = arith.muli %c2_i32_123, %c8_i32_124 : i32
    %393 = tpu.assume_multiple %392, 8 : i32
    %394 = arith.index_cast %393 : i32 to index
    %c0_125 = arith.constant 0 : index
    %395 = vector.load %arg15[%394, %c0_125] : memref<64x96xf32, #tpu.memory_space<vmem>>, vector<8x96xf32>
    %396 = arith.truncf %389 : vector<8x32xf32> to vector<8x32xbf16>
    %c0_126 = arith.constant 0 : index
    %c0_127 = arith.constant 0 : index
    %397 = vector.load %arg8[%c0_126, %c0_127] : memref<32x96xbf16, #tpu.memory_space<vmem>>, vector<32x96xbf16>
    %cst_128 = arith.constant dense<0.000000e+00> : vector<8x96xf32>
    %398 = tpu.matmul %396, %397, %cst_128 {dimension_numbers = #tpu.dot_dimension_numbers<[1], [0], [0], [1], [0, 0, 1, 1], [], []>} : vector<8x32xbf16>, vector<32x96xbf16>, vector<8x96xf32> -> vector<8x96xf32>
    %399 = vector.extract_strided_slice %395 {offsets = [0, 0], sizes = [8, 32], strides = [1, 1]} : vector<8x96xf32> to vector<8x32xf32>
    %400 = vector.extract_strided_slice %398 {offsets = [0, 0], sizes = [8, 32], strides = [1, 1]} : vector<8x96xf32> to vector<8x32xf32>
    %401 = arith.addf %399, %400 : vector<8x32xf32>
    %402 = arith.negf %401 : vector<8x32xf32>
    %403 = math.exp %402 : vector<8x32xf32>
    %cst_129 = arith.constant 1.000000e+00 : f32
    %404 = vector.broadcast %cst_129 : f32 to vector<8x32xf32>
    %405 = arith.addf %404, %403 : vector<8x32xf32>
    %406 = arith.divf %404, %405 : vector<8x32xf32>
    %407 = vector.extract_strided_slice %395 {offsets = [0, 32], sizes = [8, 32], strides = [1, 1]} : vector<8x96xf32> to vector<8x32xf32>
    %408 = vector.extract_strided_slice %398 {offsets = [0, 32], sizes = [8, 32], strides = [1, 1]} : vector<8x96xf32> to vector<8x32xf32>
    %409 = arith.addf %407, %408 : vector<8x32xf32>
    %410 = arith.negf %409 : vector<8x32xf32>
    %411 = math.exp %410 : vector<8x32xf32>
    %cst_130 = arith.constant 1.000000e+00 : f32
    %412 = vector.broadcast %cst_130 : f32 to vector<8x32xf32>
    %413 = arith.addf %412, %411 : vector<8x32xf32>
    %414 = arith.divf %412, %413 : vector<8x32xf32>
    %415 = vector.extract_strided_slice %395 {offsets = [0, 64], sizes = [8, 32], strides = [1, 1]} : vector<8x96xf32> to vector<8x32xf32>
    %416 = vector.extract_strided_slice %398 {offsets = [0, 64], sizes = [8, 32], strides = [1, 1]} : vector<8x96xf32> to vector<8x32xf32>
    %417 = arith.addf %416, %317 : vector<8x32xf32>
    %418 = arith.mulf %406, %417 : vector<8x32xf32>
    %419 = arith.addf %415, %418 : vector<8x32xf32>
    %420 = math.tanh %419 : vector<8x32xf32>
    %cst_131 = arith.constant 1.000000e+00 : f32
    %421 = vector.broadcast %cst_131 : f32 to vector<8x32xf32>
    %422 = arith.subf %421, %414 : vector<8x32xf32>
    %423 = arith.mulf %422, %420 : vector<8x32xf32>
    %424 = arith.mulf %414, %389 : vector<8x32xf32>
    %425 = arith.addf %423, %424 : vector<8x32xf32>
    %426 = arith.index_cast %393 : i32 to index
    %c0_132 = arith.constant 0 : index
    %427 = vector.load %arg14[%426, %c0_132] : memref<64x32xf32, #tpu.memory_space<vmem>>, vector<8x32xf32>
    tpu.vector_store %arg14[%426, %c0_132], %425 {strides = array<i32>} : memref<64x32xf32, #tpu.memory_space<vmem>>, vector<8x32xf32>,
    %c3_i32_133 = arith.constant 3 : i32
    %c8_i32_134 = arith.constant 8 : i32
    %428 = arith.muli %c3_i32_133, %c8_i32_134 : i32
    %429 = tpu.assume_multiple %428, 8 : i32
    %430 = arith.index_cast %429 : i32 to index
    %c0_135 = arith.constant 0 : index
    %431 = vector.load %arg15[%430, %c0_135] : memref<64x96xf32, #tpu.memory_space<vmem>>, vector<8x96xf32>
    %432 = arith.truncf %425 : vector<8x32xf32> to vector<8x32xbf16>
    %c0_136 = arith.constant 0 : index
    %c0_137 = arith.constant 0 : index
    %433 = vector.load %arg8[%c0_136, %c0_137] : memref<32x96xbf16, #tpu.memory_space<vmem>>, vector<32x96xbf16>
    %cst_138 = arith.constant dense<0.000000e+00> : vector<8x96xf32>
    %434 = tpu.matmul %432, %433, %cst_138 {dimension_numbers = #tpu.dot_dimension_numbers<[1], [0], [0], [1], [0, 0, 1, 1], [], []>} : vector<8x32xbf16>, vector<32x96xbf16>, vector<8x96xf32> -> vector<8x96xf32>
    %435 = vector.extract_strided_slice %431 {offsets = [0, 0], sizes = [8, 32], strides = [1, 1]} : vector<8x96xf32> to vector<8x32xf32>
    %436 = vector.extract_strided_slice %434 {offsets = [0, 0], sizes = [8, 32], strides = [1, 1]} : vector<8x96xf32> to vector<8x32xf32>
    %437 = arith.addf %435, %436 : vector<8x32xf32>
    %438 = arith.negf %437 : vector<8x32xf32>
    %439 = math.exp %438 : vector<8x32xf32>
    %cst_139 = arith.constant 1.000000e+00 : f32
    %440 = vector.broadcast %cst_139 : f32 to vector<8x32xf32>
    %441 = arith.addf %440, %439 : vector<8x32xf32>
    %442 = arith.divf %440, %441 : vector<8x32xf32>
    %443 = vector.extract_strided_slice %431 {offsets = [0, 32], sizes = [8, 32], strides = [1, 1]} : vector<8x96xf32> to vector<8x32xf32>
    %444 = vector.extract_strided_slice %434 {offsets = [0, 32], sizes = [8, 32], strides = [1, 1]} : vector<8x96xf32> to vector<8x32xf32>
    %445 = arith.addf %443, %444 : vector<8x32xf32>
    %446 = arith.negf %445 : vector<8x32xf32>
    %447 = math.exp %446 : vector<8x32xf32>
    %cst_140 = arith.constant 1.000000e+00 : f32
    %448 = vector.broadcast %cst_140 : f32 to vector<8x32xf32>
    %449 = arith.addf %448, %447 : vector<8x32xf32>
    %450 = arith.divf %448, %449 : vector<8x32xf32>
    %451 = vector.extract_strided_slice %431 {offsets = [0, 64], sizes = [8, 32], strides = [1, 1]} : vector<8x96xf32> to vector<8x32xf32>
    %452 = vector.extract_strided_slice %434 {offsets = [0, 64], sizes = [8, 32], strides = [1, 1]} : vector<8x96xf32> to vector<8x32xf32>
    %453 = arith.addf %452, %317 : vector<8x32xf32>
    %454 = arith.mulf %442, %453 : vector<8x32xf32>
    %455 = arith.addf %451, %454 : vector<8x32xf32>
    %456 = math.tanh %455 : vector<8x32xf32>
    %cst_141 = arith.constant 1.000000e+00 : f32
    %457 = vector.broadcast %cst_141 : f32 to vector<8x32xf32>
    %458 = arith.subf %457, %450 : vector<8x32xf32>
    %459 = arith.mulf %458, %456 : vector<8x32xf32>
    %460 = arith.mulf %450, %425 : vector<8x32xf32>
    %461 = arith.addf %459, %460 : vector<8x32xf32>
    %462 = arith.index_cast %429 : i32 to index
    %c0_142 = arith.constant 0 : index
    %463 = vector.load %arg14[%462, %c0_142] : memref<64x32xf32, #tpu.memory_space<vmem>>, vector<8x32xf32>
    tpu.vector_store %arg14[%462, %c0_142], %461 {strides = array<i32>} : memref<64x32xf32, #tpu.memory_space<vmem>>, vector<8x32xf32>,
    %c4_i32_143 = arith.constant 4 : i32
    %c8_i32_144 = arith.constant 8 : i32
    %464 = arith.muli %c4_i32_143, %c8_i32_144 : i32
    %465 = tpu.assume_multiple %464, 8 : i32
    %466 = arith.index_cast %465 : i32 to index
    %c0_145 = arith.constant 0 : index
    %467 = vector.load %arg15[%466, %c0_145] : memref<64x96xf32, #tpu.memory_space<vmem>>, vector<8x96xf32>
    %468 = arith.truncf %461 : vector<8x32xf32> to vector<8x32xbf16>
    %c0_146 = arith.constant 0 : index
    %c0_147 = arith.constant 0 : index
    %469 = vector.load %arg8[%c0_146, %c0_147] : memref<32x96xbf16, #tpu.memory_space<vmem>>, vector<32x96xbf16>
    %cst_148 = arith.constant dense<0.000000e+00> : vector<8x96xf32>
    %470 = tpu.matmul %468, %469, %cst_148 {dimension_numbers = #tpu.dot_dimension_numbers<[1], [0], [0], [1], [0, 0, 1, 1], [], []>} : vector<8x32xbf16>, vector<32x96xbf16>, vector<8x96xf32> -> vector<8x96xf32>
    %471 = vector.extract_strided_slice %467 {offsets = [0, 0], sizes = [8, 32], strides = [1, 1]} : vector<8x96xf32> to vector<8x32xf32>
    %472 = vector.extract_strided_slice %470 {offsets = [0, 0], sizes = [8, 32], strides = [1, 1]} : vector<8x96xf32> to vector<8x32xf32>
    %473 = arith.addf %471, %472 : vector<8x32xf32>
    %474 = arith.negf %473 : vector<8x32xf32>
    %475 = math.exp %474 : vector<8x32xf32>
    %cst_149 = arith.constant 1.000000e+00 : f32
    %476 = vector.broadcast %cst_149 : f32 to vector<8x32xf32>
    %477 = arith.addf %476, %475 : vector<8x32xf32>
    %478 = arith.divf %476, %477 : vector<8x32xf32>
    %479 = vector.extract_strided_slice %467 {offsets = [0, 32], sizes = [8, 32], strides = [1, 1]} : vector<8x96xf32> to vector<8x32xf32>
    %480 = vector.extract_strided_slice %470 {offsets = [0, 32], sizes = [8, 32], strides = [1, 1]} : vector<8x96xf32> to vector<8x32xf32>
    %481 = arith.addf %479, %480 : vector<8x32xf32>
    %482 = arith.negf %481 : vector<8x32xf32>
    %483 = math.exp %482 : vector<8x32xf32>
    %cst_150 = arith.constant 1.000000e+00 : f32
    %484 = vector.broadcast %cst_150 : f32 to vector<8x32xf32>
    %485 = arith.addf %484, %483 : vector<8x32xf32>
    %486 = arith.divf %484, %485 : vector<8x32xf32>
    %487 = vector.extract_strided_slice %467 {offsets = [0, 64], sizes = [8, 32], strides = [1, 1]} : vector<8x96xf32> to vector<8x32xf32>
    %488 = vector.extract_strided_slice %470 {offsets = [0, 64], sizes = [8, 32], strides = [1, 1]} : vector<8x96xf32> to vector<8x32xf32>
    %489 = arith.addf %488, %317 : vector<8x32xf32>
    %490 = arith.mulf %478, %489 : vector<8x32xf32>
    %491 = arith.addf %487, %490 : vector<8x32xf32>
    %492 = math.tanh %491 : vector<8x32xf32>
    %cst_151 = arith.constant 1.000000e+00 : f32
    %493 = vector.broadcast %cst_151 : f32 to vector<8x32xf32>
    %494 = arith.subf %493, %486 : vector<8x32xf32>
    %495 = arith.mulf %494, %492 : vector<8x32xf32>
    %496 = arith.mulf %486, %461 : vector<8x32xf32>
    %497 = arith.addf %495, %496 : vector<8x32xf32>
    %498 = arith.index_cast %465 : i32 to index
    %c0_152 = arith.constant 0 : index
    %499 = vector.load %arg14[%498, %c0_152] : memref<64x32xf32, #tpu.memory_space<vmem>>, vector<8x32xf32>
    tpu.vector_store %arg14[%498, %c0_152], %497 {strides = array<i32>} : memref<64x32xf32, #tpu.memory_space<vmem>>, vector<8x32xf32>,
    %c5_i32_153 = arith.constant 5 : i32
    %c8_i32_154 = arith.constant 8 : i32
    %500 = arith.muli %c5_i32_153, %c8_i32_154 : i32
    %501 = tpu.assume_multiple %500, 8 : i32
    %502 = arith.index_cast %501 : i32 to index
    %c0_155 = arith.constant 0 : index
    %503 = vector.load %arg15[%502, %c0_155] : memref<64x96xf32, #tpu.memory_space<vmem>>, vector<8x96xf32>
    %504 = arith.truncf %497 : vector<8x32xf32> to vector<8x32xbf16>
    %c0_156 = arith.constant 0 : index
    %c0_157 = arith.constant 0 : index
    %505 = vector.load %arg8[%c0_156, %c0_157] : memref<32x96xbf16, #tpu.memory_space<vmem>>, vector<32x96xbf16>
    %cst_158 = arith.constant dense<0.000000e+00> : vector<8x96xf32>
    %506 = tpu.matmul %504, %505, %cst_158 {dimension_numbers = #tpu.dot_dimension_numbers<[1], [0], [0], [1], [0, 0, 1, 1], [], []>} : vector<8x32xbf16>, vector<32x96xbf16>, vector<8x96xf32> -> vector<8x96xf32>
    %507 = vector.extract_strided_slice %503 {offsets = [0, 0], sizes = [8, 32], strides = [1, 1]} : vector<8x96xf32> to vector<8x32xf32>
    %508 = vector.extract_strided_slice %506 {offsets = [0, 0], sizes = [8, 32], strides = [1, 1]} : vector<8x96xf32> to vector<8x32xf32>
    %509 = arith.addf %507, %508 : vector<8x32xf32>
    %510 = arith.negf %509 : vector<8x32xf32>
    %511 = math.exp %510 : vector<8x32xf32>
    %cst_159 = arith.constant 1.000000e+00 : f32
    %512 = vector.broadcast %cst_159 : f32 to vector<8x32xf32>
    %513 = arith.addf %512, %511 : vector<8x32xf32>
    %514 = arith.divf %512, %513 : vector<8x32xf32>
    %515 = vector.extract_strided_slice %503 {offsets = [0, 32], sizes = [8, 32], strides = [1, 1]} : vector<8x96xf32> to vector<8x32xf32>
    %516 = vector.extract_strided_slice %506 {offsets = [0, 32], sizes = [8, 32], strides = [1, 1]} : vector<8x96xf32> to vector<8x32xf32>
    %517 = arith.addf %515, %516 : vector<8x32xf32>
    %518 = arith.negf %517 : vector<8x32xf32>
    %519 = math.exp %518 : vector<8x32xf32>
    %cst_160 = arith.constant 1.000000e+00 : f32
    %520 = vector.broadcast %cst_160 : f32 to vector<8x32xf32>
    %521 = arith.addf %520, %519 : vector<8x32xf32>
    %522 = arith.divf %520, %521 : vector<8x32xf32>
    %523 = vector.extract_strided_slice %503 {offsets = [0, 64], sizes = [8, 32], strides = [1, 1]} : vector<8x96xf32> to vector<8x32xf32>
    %524 = vector.extract_strided_slice %506 {offsets = [0, 64], sizes = [8, 32], strides = [1, 1]} : vector<8x96xf32> to vector<8x32xf32>
    %525 = arith.addf %524, %317 : vector<8x32xf32>
    %526 = arith.mulf %514, %525 : vector<8x32xf32>
    %527 = arith.addf %523, %526 : vector<8x32xf32>
    %528 = math.tanh %527 : vector<8x32xf32>
    %cst_161 = arith.constant 1.000000e+00 : f32
    %529 = vector.broadcast %cst_161 : f32 to vector<8x32xf32>
    %530 = arith.subf %529, %522 : vector<8x32xf32>
    %531 = arith.mulf %530, %528 : vector<8x32xf32>
    %532 = arith.mulf %522, %497 : vector<8x32xf32>
    %533 = arith.addf %531, %532 : vector<8x32xf32>
    %534 = arith.index_cast %501 : i32 to index
    %c0_162 = arith.constant 0 : index
    %535 = vector.load %arg14[%534, %c0_162] : memref<64x32xf32, #tpu.memory_space<vmem>>, vector<8x32xf32>
    tpu.vector_store %arg14[%534, %c0_162], %533 {strides = array<i32>} : memref<64x32xf32, #tpu.memory_space<vmem>>, vector<8x32xf32>,
    %c6_i32_163 = arith.constant 6 : i32
    %c8_i32_164 = arith.constant 8 : i32
    %536 = arith.muli %c6_i32_163, %c8_i32_164 : i32
    %537 = tpu.assume_multiple %536, 8 : i32
    %538 = arith.index_cast %537 : i32 to index
    %c0_165 = arith.constant 0 : index
    %539 = vector.load %arg15[%538, %c0_165] : memref<64x96xf32, #tpu.memory_space<vmem>>, vector<8x96xf32>
    %540 = arith.truncf %533 : vector<8x32xf32> to vector<8x32xbf16>
    %c0_166 = arith.constant 0 : index
    %c0_167 = arith.constant 0 : index
    %541 = vector.load %arg8[%c0_166, %c0_167] : memref<32x96xbf16, #tpu.memory_space<vmem>>, vector<32x96xbf16>
    %cst_168 = arith.constant dense<0.000000e+00> : vector<8x96xf32>
    %542 = tpu.matmul %540, %541, %cst_168 {dimension_numbers = #tpu.dot_dimension_numbers<[1], [0], [0], [1], [0, 0, 1, 1], [], []>} : vector<8x32xbf16>, vector<32x96xbf16>, vector<8x96xf32> -> vector<8x96xf32>
    %543 = vector.extract_strided_slice %539 {offsets = [0, 0], sizes = [8, 32], strides = [1, 1]} : vector<8x96xf32> to vector<8x32xf32>
    %544 = vector.extract_strided_slice %542 {offsets = [0, 0], sizes = [8, 32], strides = [1, 1]} : vector<8x96xf32> to vector<8x32xf32>
    %545 = arith.addf %543, %544 : vector<8x32xf32>
    %546 = arith.negf %545 : vector<8x32xf32>
    %547 = math.exp %546 : vector<8x32xf32>
    %cst_169 = arith.constant 1.000000e+00 : f32
    %548 = vector.broadcast %cst_169 : f32 to vector<8x32xf32>
    %549 = arith.addf %548, %547 : vector<8x32xf32>
    %550 = arith.divf %548, %549 : vector<8x32xf32>
    %551 = vector.extract_strided_slice %539 {offsets = [0, 32], sizes = [8, 32], strides = [1, 1]} : vector<8x96xf32> to vector<8x32xf32>
    %552 = vector.extract_strided_slice %542 {offsets = [0, 32], sizes = [8, 32], strides = [1, 1]} : vector<8x96xf32> to vector<8x32xf32>
    %553 = arith.addf %551, %552 : vector<8x32xf32>
    %554 = arith.negf %553 : vector<8x32xf32>
    %555 = math.exp %554 : vector<8x32xf32>
    %cst_170 = arith.constant 1.000000e+00 : f32
    %556 = vector.broadcast %cst_170 : f32 to vector<8x32xf32>
    %557 = arith.addf %556, %555 : vector<8x32xf32>
    %558 = arith.divf %556, %557 : vector<8x32xf32>
    %559 = vector.extract_strided_slice %539 {offsets = [0, 64], sizes = [8, 32], strides = [1, 1]} : vector<8x96xf32> to vector<8x32xf32>
    %560 = vector.extract_strided_slice %542 {offsets = [0, 64], sizes = [8, 32], strides = [1, 1]} : vector<8x96xf32> to vector<8x32xf32>
    %561 = arith.addf %560, %317 : vector<8x32xf32>
    %562 = arith.mulf %550, %561 : vector<8x32xf32>
    %563 = arith.addf %559, %562 : vector<8x32xf32>
    %564 = math.tanh %563 : vector<8x32xf32>
    %cst_171 = arith.constant 1.000000e+00 : f32
    %565 = vector.broadcast %cst_171 : f32 to vector<8x32xf32>
    %566 = arith.subf %565, %558 : vector<8x32xf32>
    %567 = arith.mulf %566, %564 : vector<8x32xf32>
    %568 = arith.mulf %558, %533 : vector<8x32xf32>
    %569 = arith.addf %567, %568 : vector<8x32xf32>
    %570 = arith.index_cast %537 : i32 to index
    %c0_172 = arith.constant 0 : index
    %571 = vector.load %arg14[%570, %c0_172] : memref<64x32xf32, #tpu.memory_space<vmem>>, vector<8x32xf32>
    tpu.vector_store %arg14[%570, %c0_172], %569 {strides = array<i32>} : memref<64x32xf32, #tpu.memory_space<vmem>>, vector<8x32xf32>,
    %c7_i32_173 = arith.constant 7 : i32
    %c8_i32_174 = arith.constant 8 : i32
    %572 = arith.muli %c7_i32_173, %c8_i32_174 : i32
    %573 = tpu.assume_multiple %572, 8 : i32
    %574 = arith.index_cast %573 : i32 to index
    %c0_175 = arith.constant 0 : index
    %575 = vector.load %arg15[%574, %c0_175] : memref<64x96xf32, #tpu.memory_space<vmem>>, vector<8x96xf32>
    %576 = arith.truncf %569 : vector<8x32xf32> to vector<8x32xbf16>
    %c0_176 = arith.constant 0 : index
    %c0_177 = arith.constant 0 : index
    %577 = vector.load %arg8[%c0_176, %c0_177] : memref<32x96xbf16, #tpu.memory_space<vmem>>, vector<32x96xbf16>
    %cst_178 = arith.constant dense<0.000000e+00> : vector<8x96xf32>
    %578 = tpu.matmul %576, %577, %cst_178 {dimension_numbers = #tpu.dot_dimension_numbers<[1], [0], [0], [1], [0, 0, 1, 1], [], []>} : vector<8x32xbf16>, vector<32x96xbf16>, vector<8x96xf32> -> vector<8x96xf32>
    %579 = vector.extract_strided_slice %575 {offsets = [0, 0], sizes = [8, 32], strides = [1, 1]} : vector<8x96xf32> to vector<8x32xf32>
    %580 = vector.extract_strided_slice %578 {offsets = [0, 0], sizes = [8, 32], strides = [1, 1]} : vector<8x96xf32> to vector<8x32xf32>
    %581 = arith.addf %579, %580 : vector<8x32xf32>
    %582 = arith.negf %581 : vector<8x32xf32>
    %583 = math.exp %582 : vector<8x32xf32>
    %cst_179 = arith.constant 1.000000e+00 : f32
    %584 = vector.broadcast %cst_179 : f32 to vector<8x32xf32>
    %585 = arith.addf %584, %583 : vector<8x32xf32>
    %586 = arith.divf %584, %585 : vector<8x32xf32>
    %587 = vector.extract_strided_slice %575 {offsets = [0, 32], sizes = [8, 32], strides = [1, 1]} : vector<8x96xf32> to vector<8x32xf32>
    %588 = vector.extract_strided_slice %578 {offsets = [0, 32], sizes = [8, 32], strides = [1, 1]} : vector<8x96xf32> to vector<8x32xf32>
    %589 = arith.addf %587, %588 : vector<8x32xf32>
    %590 = arith.negf %589 : vector<8x32xf32>
    %591 = math.exp %590 : vector<8x32xf32>
    %cst_180 = arith.constant 1.000000e+00 : f32
    %592 = vector.broadcast %cst_180 : f32 to vector<8x32xf32>
    %593 = arith.addf %592, %591 : vector<8x32xf32>
    %594 = arith.divf %592, %593 : vector<8x32xf32>
    %595 = vector.extract_strided_slice %575 {offsets = [0, 64], sizes = [8, 32], strides = [1, 1]} : vector<8x96xf32> to vector<8x32xf32>
    %596 = vector.extract_strided_slice %578 {offsets = [0, 64], sizes = [8, 32], strides = [1, 1]} : vector<8x96xf32> to vector<8x32xf32>
    %597 = arith.addf %596, %317 : vector<8x32xf32>
    %598 = arith.mulf %586, %597 : vector<8x32xf32>
    %599 = arith.addf %595, %598 : vector<8x32xf32>
    %600 = math.tanh %599 : vector<8x32xf32>
    %cst_181 = arith.constant 1.000000e+00 : f32
    %601 = vector.broadcast %cst_181 : f32 to vector<8x32xf32>
    %602 = arith.subf %601, %594 : vector<8x32xf32>
    %603 = arith.mulf %602, %600 : vector<8x32xf32>
    %604 = arith.mulf %594, %569 : vector<8x32xf32>
    %605 = arith.addf %603, %604 : vector<8x32xf32>
    %606 = arith.index_cast %573 : i32 to index
    %c0_182 = arith.constant 0 : index
    %607 = vector.load %arg14[%606, %c0_182] : memref<64x32xf32, #tpu.memory_space<vmem>>, vector<8x32xf32>
    tpu.vector_store %arg14[%606, %c0_182], %605 {strides = array<i32>} : memref<64x32xf32, #tpu.memory_space<vmem>>, vector<8x32xf32>,
    %c8_i32_183 = arith.constant 8 : i32
    %c1_184 = arith.constant 1 : index
    %c0_185 = arith.constant 0 : index
    %c0_186 = arith.constant 0 : index
    %608 = vector.load %arg13[%c1_184, %c0_185, %c0_186] : memref<2x8x32xf32, #tpu.memory_space<vmem>>, vector<1x8x32xf32>
    %609 = vector.shape_cast %608 : vector<1x8x32xf32> to vector<8x32xf32>
    %610 = vector.shape_cast %605 : vector<8x32xf32> to vector<1x8x32xf32>
    tpu.vector_store %arg13[%c1_184, %c0_185, %c0_186], %610 {strides = array<i32>} : memref<2x8x32xf32, #tpu.memory_space<vmem>>, vector<1x8x32xf32>,
    %c0_187 = arith.constant 0 : index
    %c0_188 = arith.constant 0 : index
    %611 = vector.load %arg14[%c0_187, %c0_188] : memref<64x32xf32, #tpu.memory_space<vmem>>, vector<64x32xf32>
    %c0_189 = arith.constant 0 : index
    %c0_190 = arith.constant 0 : index
    %c0_191 = arith.constant 0 : index
    %612 = vector.load %arg11[%c0_189, %c0_190, %c0_191] : memref<1x64x32xf32, #tpu.memory_space<vmem>>, vector<1x64x32xf32>
    %613 = vector.shape_cast %612 : vector<1x64x32xf32> to vector<64x32xf32>
    %614 = vector.shape_cast %611 : vector<64x32xf32> to vector<1x64x32xf32>
    tpu.vector_store %arg11[%c0_189, %c0_190, %c0_191], %614 {strides = array<i32>} : memref<1x64x32xf32, #tpu.memory_space<vmem>>, vector<1x64x32xf32>,
    %c0_i32_192 = arith.constant 0 : i32
    %615 = arith.cmpi eq, %arg1, %c0_i32_192 : i32
    %616 = arith.extui %615 : i1 to i32
    %c0_i32_193 = arith.constant 0 : i32
    %617 = arith.cmpi ne, %616, %c0_i32_193 : i32
    scf.if %617 {
      %c0_194 = arith.constant 0 : index
      %c0_195 = arith.constant 0 : index
      %c0_196 = arith.constant 0 : index
      %618 = vector.load %arg13[%c0_194, %c0_195, %c0_196] : memref<2x8x32xf32, #tpu.memory_space<vmem>>, vector<2x8x32xf32>
      %c0_197 = arith.constant 0 : index
      %c0_198 = arith.constant 0 : index
      %c0_199 = arith.constant 0 : index
      %619 = vector.load %arg12[%c0_197, %c0_198, %c0_199] : memref<2x8x32xf32, #tpu.memory_space<vmem>>, vector<2x8x32xf32>
      tpu.vector_store %arg12[%c0_197, %c0_198, %c0_199], %618 {strides = array<i32>} : memref<2x8x32xf32, #tpu.memory_space<vmem>>, vector<2x8x32xf32>,
    } else {
    }
    return
  }
  func.func @transform_0(%arg0: i32, %arg1: i32) -> (i32, i32, i32) {
    %c0_i32 = arith.constant 0 : i32
    %c0_i32_0 = arith.constant 0 : i32
    return %arg0, %arg1, %c0_i32 : i32, i32, i32
  }
  func.func @transform_1(%arg0: i32, %arg1: i32) -> (i32, i32) {
    %c0_i32 = arith.constant 0 : i32
    %c0_i32_0 = arith.constant 0 : i32
    %c0_i32_1 = arith.constant 0 : i32
    return %c0_i32, %c0_i32_0 : i32, i32
  }
  func.func @transform_2(%arg0: i32, %arg1: i32) -> (i32, i32) {
    %c0_i32 = arith.constant 0 : i32
    %c0_i32_0 = arith.constant 0 : i32
    %c0_i32_1 = arith.constant 0 : i32
    return %c0_i32, %c0_i32_0 : i32, i32
  }
  func.func @transform_3(%arg0: i32, %arg1: i32) -> (i32, i32) {
    %c0_i32 = arith.constant 0 : i32
    %c0_i32_0 = arith.constant 0 : i32
    %c0_i32_1 = arith.constant 0 : i32
    return %c0_i32, %c0_i32_0 : i32, i32
  }
  func.func @transform_4(%arg0: i32, %arg1: i32) -> (i32, i32) {
    %c0_i32 = arith.constant 0 : i32
    %c0_i32_0 = arith.constant 0 : i32
    %c0_i32_1 = arith.constant 0 : i32
    return %c0_i32, %c0_i32_0 : i32, i32
  }
  func.func @transform_5(%arg0: i32, %arg1: i32) -> (i32, i32) {
    %c0_i32 = arith.constant 0 : i32
    %c0_i32_0 = arith.constant 0 : i32
    %c0_i32_1 = arith.constant 0 : i32
    return %c0_i32, %c0_i32_0 : i32, i32
  }
  func.func @transform_6(%arg0: i32, %arg1: i32) -> (i32, i32) {
    %c0_i32 = arith.constant 0 : i32
    %c0_i32_0 = arith.constant 0 : i32
    %c0_i32_1 = arith.constant 0 : i32
    return %c0_i32, %c0_i32_0 : i32, i32
  }
  func.func @transform_7(%arg0: i32, %arg1: i32) -> (i32, i32) {
    %c0_i32 = arith.constant 0 : i32
    %c0_i32_0 = arith.constant 0 : i32
    %c0_i32_1 = arith.constant 0 : i32
    return %c0_i32, %c0_i32_0 : i32, i32
  }
  func.func @transform_8(%arg0: i32, %arg1: i32) -> (i32, i32) {
    %c0_i32 = arith.constant 0 : i32
    %c0_i32_0 = arith.constant 0 : i32
    %c0_i32_1 = arith.constant 0 : i32
    return %c0_i32, %c0_i32_0 : i32, i32
  }
  func.func @transform_9(%arg0: i32, %arg1: i32) -> (i32, i32, i32) {
    %c0_i32 = arith.constant 0 : i32
    %c0_i32_0 = arith.constant 0 : i32
    return %arg0, %arg1, %c0_i32 : i32, i32, i32
  }
  func.func @transform_10(%arg0: i32, %arg1: i32) -> (i32, i32, i32) {
    %c0_i32 = arith.constant 0 : i32
    %c0_i32_0 = arith.constant 0 : i32
    %c0_i32_1 = arith.constant 0 : i32
    return %c0_i32, %arg0, %c0_i32_0 : i32, i32, i32
  }
}

</mosaic_0001>

<llo_original>
// kernel: rnn_encoder_forward.1
$region0: #{rnn_encoder_forward.1}
  #allocation0 [shape = 'u32[]', space=smem, size = 0x4, offset = 0x4, fixed_abs, tag = 'smem constant byte address 0x4 - core index']
  #allocation1 [shape = 'u32[72,128]{1,0:T(1,128)}', space=vmem, size = 0x9000, scoped, tag = 'internal scratch']
  #allocation2 [shape = 'f32[2,8,32]{2,1,0:T(8,128)}', space=vmem, size = 0x2000, scoped, tag = 'scratch operand']
  #allocation3 [shape = 'f32[64,32]{1,0:T(8,128)}', space=vmem, size = 0x8000, scoped, tag = 'scratch operand']
  #allocation4 [shape = 'f32[64,96]{1,0:T(8,128)}', space=vmem, size = 0x8000, scoped, tag = 'scratch operand']
  %s0 = inlined_call_operand.vmem [shape: bf16[1,64,32], index: 0, kind: input, shape index: {}]
  %s1 = inlined_call_operand.vmem [shape: bf16[32,96], index: 1, kind: input, shape index: {}]
  %s2 = inlined_call_operand.vmem [shape: bf16[32,96], index: 2, kind: input, shape index: {}]
  %s3 = inlined_call_operand.vmem [shape: f32[1,96], index: 3, kind: input, shape index: {}]
  %s4 = inlined_call_operand.vmem [shape: f32[1,96], index: 4, kind: input, shape index: {}]
  %s5 = inlined_call_operand.vmem [shape: bf16[32,96], index: 5, kind: input, shape index: {}]
  %s6 = inlined_call_operand.vmem [shape: bf16[32,96], index: 6, kind: input, shape index: {}]
  %s7 = inlined_call_operand.vmem [shape: f32[1,32], index: 7, kind: input, shape index: {}]
  %s8 = inlined_call_operand.vmem [shape: f32[1,32], index: 8, kind: input, shape index: {}]
  %s9 = inlined_call_operand.vmem [shape: f32[1,64,32], index: 9, kind: output, shape index: {0}]
  %s10 = inlined_call_operand.vmem [shape: f32[2,8,32], index: 10, kind: output, shape index: {1}]
  %11 = xla_tuple %s9, %s10
  %s12 = sld [smem:[#allocation0]]
  $region62: #{rnn_encoder_forward.1} parent=0
    _
  %s14 = ssub.s32 1, %s12
  %s15 = scalar_select 0, %s14, %s12
  // Predicated region
  $region2: #{rnn_encoder_forward.1} parent=0 // pred_check
    _
  $region3: #{rnn_encoder_forward.1} parent=0 // pred_check_branch
    %17 = sbr.rel (0) target = $region5
  $region4: #{rnn_encoder_forward.1} parent=0 // pred_region
    _
  $region5: #{rnn_encoder_forward.1} parent=0 // pred_fallthru
    _
  // Predicated region
  $region6: #{rnn_encoder_forward.1} parent=0 // pred_check
    _
  $region7: #{rnn_encoder_forward.1} parent=0 // pred_check_branch
    %19 = sbr.rel (0) target = $region9
  $region8: #{rnn_encoder_forward.1} parent=0 // pred_region
    _
  $region9: #{rnn_encoder_forward.1} parent=0 // pred_fallthru
    _
  // Predicated region
  $region10: #{rnn_encoder_forward.1} parent=0 // pred_check
    _
  $region11: #{rnn_encoder_forward.1} parent=0 // pred_check_branch
    %21 = sbr.rel (0) target = $region13
  $region12: #{rnn_encoder_forward.1} parent=0 // pred_region
    _
  $region13: #{rnn_encoder_forward.1} parent=0 // pred_fallthru
    _
  // Predicated region
  $region14: #{rnn_encoder_forward.1} parent=0 // pred_check
    _
  $region15: #{rnn_encoder_forward.1} parent=0 // pred_check_branch
    %23 = sbr.rel (0) target = $region17
  $region16: #{rnn_encoder_forward.1} parent=0 // pred_region
    _
  $region17: #{rnn_encoder_forward.1} parent=0 // pred_fallthru
    _
  // Predicated region
  $region18: #{rnn_encoder_forward.1} parent=0 // pred_check
    _
  $region19: #{rnn_encoder_forward.1} parent=0 // pred_check_branch
    %25 = sbr.rel (0) target = $region21
  $region20: #{rnn_encoder_forward.1} parent=0 // pred_region
    _
  $region21: #{rnn_encoder_forward.1} parent=0 // pred_fallthru
    _
  // Predicated region
  $region22: #{rnn_encoder_forward.1} parent=0 // pred_check
    _
  $region23: #{rnn_encoder_forward.1} parent=0 // pred_check_branch
    %27 = sbr.rel (0) target = $region25
  $region24: #{rnn_encoder_forward.1} parent=0 // pred_region
    _
  $region25: #{rnn_encoder_forward.1} parent=0 // pred_fallthru
    _
  // Predicated region
  $region26: #{rnn_encoder_forward.1} parent=0 // pred_check
    _
  $region27: #{rnn_encoder_forward.1} parent=0 // pred_check_branch
    %29 = sbr.rel (0) target = $region29
  $region28: #{rnn_encoder_forward.1} parent=0 // pred_region
    _
  $region29: #{rnn_encoder_forward.1} parent=0 // pred_fallthru
    _
  // Predicated region
  $region30: #{rnn_encoder_forward.1} parent=0 // pred_check
    _
  $region31: #{rnn_encoder_forward.1} parent=0 // pred_check_branch
    %31 = sbr.rel (0) target = $region33
  $region32: #{rnn_encoder_forward.1} parent=0 // pred_region
    _
  $region33: #{rnn_encoder_forward.1} parent=0 // pred_fallthru
    _
  // Predicated region
  $region34: #{rnn_encoder_forward.1} parent=0 // pred_check
    _
  $region35: #{rnn_encoder_forward.1} parent=0 // pred_check_branch
    %33 = sbr.rel (0) target = $region37
  $region36: #{rnn_encoder_forward.1} parent=0 // pred_region
    _
  $region37: #{rnn_encoder_forward.1} parent=0 // pred_fallthru
    _
  %p35 = scmp.eq.s32.totalorder 0, 0
  // Predicated region
  $region38: #{rnn_encoder_forward.1} parent=0 // pred_check
    %p36 = pneg %p35
  $region39: #{rnn_encoder_forward.1} parent=0 // pred_check_branch
    %38 = sbr.rel (%p36) target = $region41
  $region40: #{rnn_encoder_forward.1} parent=0 // pred_region
    %vm39 = vcmask 261120
    %40 = vst.msk [vmem:[#allocation2] sm:$0xff] %vm39, 0.0
    %41 = vst.msk [vmem:[#allocation2 + $0x8] sm:$0xff] %vm39, 0.0
  $region41: #{rnn_encoder_forward.1} parent=0 // pred_fallthru
    _
  %v42 = vld [vmem:[%s0] sm:$0xf]
  %v43 = vld [vmem:[%s0 + $0x4] sm:$0xf]
  %v44 = vld [vmem:[%s0 + $0x8] sm:$0xf]
  %v45 = vld [vmem:[%s0 + $0xc] sm:$0xf]
  %v46 = vld [vmem:[%s0 + $0x10] sm:$0xf]
  %v47 = vld [vmem:[%s0 + $0x14] sm:$0xf]
  %v48 = vld [vmem:[%s0 + $0x18] sm:$0xf]
  %v49 = vld [vmem:[%s0 + $0x1c] sm:$0xf]
  %v50 = vld [vmem:[%s1] sm:$0xf]
  %v51 = vld [vmem:[%s1 + $0x4] sm:$0xf]
  %v52 = vld [vmem:[%s1 + $0x8] sm:$0xf]
  %v53 = vld [vmem:[%s1 + $0xc] sm:$0xf]
  %v54 = vld [vmem:[%s3] sm:$0x1]
  %v56 = vperm.slane %v54, 0
  %v66 = vunpack.c.l.b16 %v42
  %v67 = vunpack.c.l.b16 %v43
  %v68 = vunpack.c.l.b16 %v44
  %v69 = vunpack.c.l.b16 %v45
  %v70 = vunpack.c.l.b16 %v46
  %v71 = vunpack.c.l.b16 %v47
  %v72 = vunpack.c.l.b16 %v48
  %v73 = vunpack.c.l.b16 %v49
  %v74 = vpack.c.b16 %v67, %v66
  %v75 = vpack.c.b16 %v69, %v68
  %v76 = vpack.c.b16 %v71, %v70
  %v77 = vpack.c.b16 %v73, %v72
  %v82 = vunpack.c.l.b16 %v50
  %v83 = vunpack.c.l.b16 %v51
  %v84 = vunpack.c.l.b16 %v52
  %v85 = vunpack.c.l.b16 %v53
  %v86 = vpack.c.b16 %v83, %v82
  %v87 = vpack.c.b16 %v85, %v84
  %vm90 = vcmask 261120
  %v92 = vsel %vm90, %v74, 0
  %v95 = vsel %vm90, %v75, 0
  %v98 = vsel %vm90, %v76, 0
  %v101 = vsel %vm90, %v77, 0
  %103 = vmatpush.bf16.msra.mxu0 0
  %104 = vmatpush.bf16.msra.mxu0 0
  %105 = vmatpush.bf16.msra.mxu0 0
  %106 = vmatpush.bf16.msra.mxu0 0
  %107 = vmatpush.bf16.msra.mxu0 0
  %108 = vmatpush.bf16.msra.mxu0 0
  %109 = vmatpush.bf16.msra.mxu0 %v87
  %110 = vmatpush.bf16.msra.mxu0 %v86
  %111 = vmatmul.bf16.gmra.mxu0 %v92
  %v112 = vpop.f32.mrf.mxu0
  %v113 = vadd.f32 %v56, %v112
  %v114 = vpop.f32.mrf.mxu0
  %v115 = vadd.f32 %v56, %v114
  %116 = vmatmul.bf16.gmra.mxu0 %v95
  %v117 = vpop.f32.mrf.mxu0
  %v118 = vadd.f32 %v56, %v117
  %v119 = vpop.f32.mrf.mxu0
  %v120 = vadd.f32 %v56, %v119
  %121 = vmatmul.bf16.gmra.mxu0 %v98
  %v122 = vpop.f32.mrf.mxu0
  %v123 = vadd.f32 %v56, %v122
  %v124 = vpop.f32.mrf.mxu0
  %v125 = vadd.f32 %v56, %v124
  %126 = vmatmul.bf16.gmra.mxu0 %v101
  %v127 = vpop.f32.mrf.mxu0
  %v128 = vadd.f32 %v56, %v127
  %v129 = vpop.f32.mrf.mxu0
  %v130 = vadd.f32 %v56, %v129
  %131 = vdwg.mxu0
  %vm132 = vcmask 785408
  %133 = vst.msk [vmem:[#allocation4] sm:$0xff] %vm132, %v113
  %134 = vst.msk [vmem:[#allocation4 + $0x8] sm:$0xff] %vm132, %v115
  %135 = vst.msk [vmem:[#allocation4 + $0x10] sm:$0xff] %vm132, %v118
  %136 = vst.msk [vmem:[#allocation4 + $0x18] sm:$0xff] %vm132, %v120
  %137 = vst.msk [vmem:[#allocation4 + $0x20] sm:$0xff] %vm132, %v123
  %138 = vst.msk [vmem:[#allocation4 + $0x28] sm:$0xff] %vm132, %v125
  %139 = vst.msk [vmem:[#allocation4 + $0x30] sm:$0xff] %vm132, %v128
  %140 = vst.msk [vmem:[#allocation4 + $0x38] sm:$0xff] %vm132, %v130
  %v141 = vld [vmem:[%s7] sm:$0x1]
  %v143 = vperm.slane %v141, 0
  %v144 = vld [vmem:[#allocation2] sm:$0xff]
  %v145 = vld [vmem:[#allocation4] sm:$0xff]
  %v146 = vpack.c.bf16 %v144, %v144
  %v147 = vld [vmem:[%s5] sm:$0xf]
  %v148 = vld [vmem:[%s5 + $0x4] sm:$0xf]
  %v149 = vld [vmem:[%s5 + $0x8] sm:$0xf]
  %v150 = vld [vmem:[%s5 + $0xc] sm:$0xf]
  %v155 = vunpack.c.l.b16 %v147
  %v156 = vunpack.c.l.b16 %v148
  %v157 = vunpack.c.l.b16 %v149
  %v158 = vunpack.c.l.b16 %v150
  %v159 = vpack.c.b16 %v156, %v155
  %v160 = vpack.c.b16 %v158, %v157
  %v164 = vsel %vm90, %v146, 0
  %166 = vmatpush.bf16.msra.mxu0 0
  %167 = vmatpush.bf16.msra.mxu0 0
  %168 = vmatpush.bf16.msra.mxu0 0
  %169 = vmatpush.bf16.msra.mxu0 0
  %170 = vmatpush.bf16.msra.mxu0 0
  %171 = vmatpush.bf16.msra.mxu0 0
  %172 = vmatpush.bf16.msra.mxu0 %v160
  %173 = vmatpush.bf16.msra.mxu0 %v159
  %174 = vmatmul.bf16.gmra.mxu0 %v164
  %v175 = vpop.f32.mrf.mxu0
  %v176 = vadd.f32 0.0, %v175
  %v177 = vpop.f32.mrf.mxu0
  %178 = vdwg.mxu0
  %v179 = vadd.f32 %v145, %v176
  %v180 = vxor.u32 %v179, 2147483648
  %v181 = vmul.f32 %v180, 1.442695
  %v182 = vpow.pop %v181
  %v183 = vadd.f32 %v182, 1.0
  %v184 = vrcp.pop %v183
  %v185 = vmul.f32 %v183, %v184
  %v186 = vsub.f32 1.0, %v185
  %v187 = vmul.f32 %v184, %v186
  %v188 = vadd.f32 %v184, %v187
  %vm189 = vweird.f32 %v183
  %vm190 = vweird.f32 %v184
  %vm191 = vmor %vm189, %vm190
  %v192 = vsel %vm191, %v184, %v188
  %v193 = vand.u32 2147483647, %v183
  %vm194 = vcmp.eq.f32.partialorder %v193, 8.507059e+37
  %v195 = vand.u32 %v183, 2147483648
  %v196 = vor.u32 1.1754944e-38, %v195
  %v197 = vsel %vm194, %v196, %v192
  %v198 = vmul.f32 1.0, %v197
  %199 = vrot.lane.b32.xlu0 %v143, 64
  %v200 = vpop.permute.xlu0 %199
  %v202 = vadd.f32 %v176, %v200
  %204 = vrot.lane.b32.xlu0 %v202, 64
  %v205 = vpop.permute.xlu0 %204
  %v207 = vmul.f32 %v198, %v205
  %209 = vrot.lane.b32.xlu0 %v207, 64
  %v210 = vpop.permute.xlu0 %209
  %v212 = vadd.f32 %v145, %v210
  %v213 = vtanh.pop %v212
  %v214 = vsub.f32 1.0, %v198
  %216 = vrot.lane.b32.xlu0 %v213, 96
  %v217 = vpop.permute.xlu0 %216
  %v219 = vmul.f32 %v214, %v217
  %221 = vrot.lane.b32.xlu0 %v144, 32
  %v222 = vpop.permute.xlu0 %221
  %v224 = vmul.f32 %v198, %v222
  %v225 = vadd.f32 %v219, %v224
  %227 = vrot.lane.b32.xlu0 %v225, 96
  %v228 = vpop.permute.xlu0 %227
  %230 = vst.msk [vmem:[#allocation3] sm:$0xff] %vm90, %v228
  %s231 = scalar_lea.vmem [#allocation4], 8
  %v232 = vld [vmem:[%s231] sm:$0xff]
  %v233 = vpack.c.bf16 %v225, %v225
  %v234 = vld [vmem:[%s5] sm:$0xf]
  %v235 = vld [vmem:[%s5 + $0x4] sm:$0xf]
  %v236 = vld [vmem:[%s5 + $0x8] sm:$0xf]
  %v237 = vld [vmem:[%s5 + $0xc] sm:$0xf]
  %239 = vrot.lane.b32.xlu0 %v233, 96
  %v240 = vpop.permute.xlu0 %239
  %v245 = vunpack.c.l.b16 %v234
  %v246 = vunpack.c.l.b16 %v235
  %v247 = vunpack.c.l.b16 %v236
  %v248 = vunpack.c.l.b16 %v237
  %v249 = vpack.c.b16 %v246, %v245
  %v250 = vpack.c.b16 %v248, %v247
  %v254 = vsel %vm90, %v240, 0
  %256 = vmatpush.bf16.msra.mxu0 0
  %257 = vmatpush.bf16.msra.mxu0 0
  %258 = vmatpush.bf16.msra.mxu0 0
  %259 = vmatpush.bf16.msra.mxu0 0
  %260 = vmatpush.bf16.msra.mxu0 0
  %261 = vmatpush.bf16.msra.mxu0 0
  %262 = vmatpush.bf16.msra.mxu0 %v250
  %263 = vmatpush.bf16.msra.mxu0 %v249
  %264 = vmatmul.bf16.gmra.mxu0 %v254
  %v265 = vpop.f32.mrf.mxu0
  %v266 = vadd.f32 0.0, %v265
  %v267 = vpop.f32.mrf.mxu0
  %268 = vdwg.mxu0
  %v269 = vadd.f32 %v232, %v266
  %v270 = vxor.u32 %v269, 2147483648
  %v271 = vmul.f32 %v270, 1.442695
  %v272 = vpow.pop %v271
  %v273 = vadd.f32 %v272, 1.0
  %v274 = vrcp.pop %v273
  %v275 = vmul.f32 %v273, %v274
  %v276 = vsub.f32 1.0, %v275
  %v277 = vmul.f32 %v274, %v276
  %v278 = vadd.f32 %v274, %v277
  %vm279 = vweird.f32 %v273
  %vm280 = vweird.f32 %v274
  %vm281 = vmor %vm279, %vm280
  %v282 = vsel %vm281, %v274, %v278
  %v283 = vand.u32 2147483647, %v273
  %vm284 = vcmp.eq.f32.partialorder %v283, 8.507059e+37
  %v285 = vand.u32 %v273, 2147483648
  %v286 = vor.u32 1.1754944e-38, %v285
  %v287 = vsel %vm284, %v286, %v282
  %v288 = vmul.f32 1.0, %v287
  %v289 = vadd.f32 %v266, %v200
  %291 = vrot.lane.b32.xlu0 %v289, 64
  %v292 = vpop.permute.xlu0 %291
  %v294 = vmul.f32 %v288, %v292
  %296 = vrot.lane.b32.xlu0 %v294, 64
  %v297 = vpop.permute.xlu0 %296
  %v299 = vadd.f32 %v232, %v297
  %v300 = vtanh.pop %v299
  %v301 = vsub.f32 1.0, %v288
  %303 = vrot.lane.b32.xlu0 %v300, 96
  %v304 = vpop.permute.xlu0 %303
  %v306 = vmul.f32 %v301, %v304
  %v307 = vmul.f32 %v288, %v225
  %v308 = vadd.f32 %v306, %v307
  %310 = vrot.lane.b32.xlu0 %v308, 96
  %v311 = vpop.permute.xlu0 %310
  %s313 = scalar_lea.vmem [#allocation3], 8
  %314 = vst.msk [vmem:[%s313] sm:$0xff] %vm90, %v311
  %s315 = scalar_lea.vmem [#allocation4], 16
  %v316 = vld [vmem:[%s315] sm:$0xff]
  %v317 = vpack.c.bf16 %v308, %v308
  %v318 = vld [vmem:[%s5] sm:$0xf]
  %v319 = vld [vmem:[%s5 + $0x4] sm:$0xf]
  %v320 = vld [vmem:[%s5 + $0x8] sm:$0xf]
  %v321 = vld [vmem:[%s5 + $0xc] sm:$0xf]
  %323 = vrot.lane.b32.xlu0 %v317, 96
  %v324 = vpop.permute.xlu0 %323
  %v329 = vunpack.c.l.b16 %v318
  %v330 = vunpack.c.l.b16 %v319
  %v331 = vunpack.c.l.b16 %v320
  %v332 = vunpack.c.l.b16 %v321
  %v333 = vpack.c.b16 %v330, %v329
  %v334 = vpack.c.b16 %v332, %v331
  %v338 = vsel %vm90, %v324, 0
  %340 = vmatpush.bf16.msra.mxu0 0
  %341 = vmatpush.bf16.msra.mxu0 0
  %342 = vmatpush.bf16.msra.mxu0 0
  %343 = vmatpush.bf16.msra.mxu0 0
  %344 = vmatpush.bf16.msra.mxu0 0
  %345 = vmatpush.bf16.msra.mxu0 0
  %346 = vmatpush.bf16.msra.mxu0 %v334
  %347 = vmatpush.bf16.msra.mxu0 %v333
  %348 = vmatmul.bf16.gmra.mxu0 %v338
  %v349 = vpop.f32.mrf.mxu0
  %v350 = vadd.f32 0.0, %v349
  %v351 = vpop.f32.mrf.mxu0
  %352 = vdwg.mxu0
  %v353 = vadd.f32 %v316, %v350
  %v354 = vxor.u32 %v353, 2147483648
  %v355 = vmul.f32 %v354, 1.442695
  %v356 = vpow.pop %v355
  %v357 = vadd.f32 %v356, 1.0
  %v358 = vrcp.pop %v357
  %v359 = vmul.f32 %v357, %v358
  %v360 = vsub.f32 1.0, %v359
  %v361 = vmul.f32 %v358, %v360
  %v362 = vadd.f32 %v358, %v361
  %vm363 = vweird.f32 %v357
  %vm364 = vweird.f32 %v358
  %vm365 = vmor %vm363, %vm364
  %v366 = vsel %vm365, %v358, %v362
  %v367 = vand.u32 2147483647, %v357
  %vm368 = vcmp.eq.f32.partialorder %v367, 8.507059e+37
  %v369 = vand.u32 %v357, 2147483648
  %v370 = vor.u32 1.1754944e-38, %v369
  %v371 = vsel %vm368, %v370, %v366
  %v372 = vmul.f32 1.0, %v371
  %v373 = vadd.f32 %v350, %v200
  %375 = vrot.lane.b32.xlu0 %v373, 64
  %v376 = vpop.permute.xlu0 %375
  %v378 = vmul.f32 %v372, %v376
  %380 = vrot.lane.b32.xlu0 %v378, 64
  %v381 = vpop.permute.xlu0 %380
  %v383 = vadd.f32 %v316, %v381
  %v384 = vtanh.pop %v383
  %v385 = vsub.f32 1.0, %v372
  %387 = vrot.lane.b32.xlu0 %v384, 96
  %v388 = vpop.permute.xlu0 %387
  %v390 = vmul.f32 %v385, %v388
  %v391 = vmul.f32 %v372, %v308
  %v392 = vadd.f32 %v390, %v391
  %394 = vrot.lane.b32.xlu0 %v392, 96
  %v395 = vpop.permute.xlu0 %394
  %s397 = scalar_lea.vmem [#allocation3], 16
  %398 = vst.msk [vmem:[%s397] sm:$0xff] %vm90, %v395
  %s399 = scalar_lea.vmem [#allocation4], 24
  %v400 = vld [vmem:[%s399] sm:$0xff]
  %v401 = vpack.c.bf16 %v392, %v392
  %v402 = vld [vmem:[%s5] sm:$0xf]
  %v403 = vld [vmem:[%s5 + $0x4] sm:$0xf]
  %v404 = vld [vmem:[%s5 + $0x8] sm:$0xf]
  %v405 = vld [vmem:[%s5 + $0xc] sm:$0xf]
  %407 = vrot.lane.b32.xlu0 %v401, 96
  %v408 = vpop.permute.xlu0 %407
  %v413 = vunpack.c.l.b16 %v402
  %v414 = vunpack.c.l.b16 %v403
  %v415 = vunpack.c.l.b16 %v404
  %v416 = vunpack.c.l.b16 %v405
  %v417 = vpack.c.b16 %v414, %v413
  %v418 = vpack.c.b16 %v416, %v415
  %v422 = vsel %vm90, %v408, 0
  %424 = vmatpush.bf16.msra.mxu0 0
  %425 = vmatpush.bf16.msra.mxu0 0
  %426 = vmatpush.bf16.msra.mxu0 0
  %427 = vmatpush.bf16.msra.mxu0 0
  %428 = vmatpush.bf16.msra.mxu0 0
  %429 = vmatpush.bf16.msra.mxu0 0
  %430 = vmatpush.bf16.msra.mxu0 %v418
  %431 = vmatpush.bf16.msra.mxu0 %v417
  %432 = vmatmul.bf16.gmra.mxu0 %v422
  %v433 = vpop.f32.mrf.mxu0
  %v434 = vadd.f32 0.0, %v433
  %v435 = vpop.f32.mrf.mxu0
  %436 = vdwg.mxu0
  %v437 = vadd.f32 %v400, %v434
  %v438 = vxor.u32 %v437, 2147483648
  %v439 = vmul.f32 %v438, 1.442695
  %v440 = vpow.pop %v439
  %v441 = vadd.f32 %v440, 1.0
  %v442 = vrcp.pop %v441
  %v443 = vmul.f32 %v441, %v442
  %v444 = vsub.f32 1.0, %v443
  %v445 = vmul.f32 %v442, %v444
  %v446 = vadd.f32 %v442, %v445
  %vm447 = vweird.f32 %v441
  %vm448 = vweird.f32 %v442
  %vm449 = vmor %vm447, %vm448
  %v450 = vsel %vm449, %v442, %v446
  %v451 = vand.u32 2147483647, %v441
  %vm452 = vcmp.eq.f32.partialorder %v451, 8.507059e+37
  %v453 = vand.u32 %v441, 2147483648
  %v454 = vor.u32 1.1754944e-38, %v453
  %v455 = vsel %vm452, %v454, %v450
  %v456 = vmul.f32 1.0, %v455
  %v457 = vadd.f32 %v434, %v200
  %459 = vrot.lane.b32.xlu0 %v457, 64
  %v460 = vpop.permute.xlu0 %459
  %v462 = vmul.f32 %v456, %v460
  %464 = vrot.lane.b32.xlu0 %v462, 64
  %v465 = vpop.permute.xlu0 %464
  %v467 = vadd.f32 %v400, %v465
  %v468 = vtanh.pop %v467
  %v469 = vsub.f32 1.0, %v456
  %471 = vrot.lane.b32.xlu0 %v468, 96
  %v472 = vpop.permute.xlu0 %471
  %v474 = vmul.f32 %v469, %v472
  %v475 = vmul.f32 %v456, %v392
  %v476 = vadd.f32 %v474, %v475
  %478 = vrot.lane.b32.xlu0 %v476, 96
  %v479 = vpop.permute.xlu0 %478
  %s481 = scalar_lea.vmem [#allocation3], 24
  %482 = vst.msk [vmem:[%s481] sm:$0xff] %vm90, %v479
  %s483 = scalar_lea.vmem [#allocation4], 32
  %v484 = vld [vmem:[%s483] sm:$0xff]
  %v485 = vpack.c.bf16 %v476, %v476
  %v486 = vld [vmem:[%s5] sm:$0xf]
  %v487 = vld [vmem:[%s5 + $0x4] sm:$0xf]
  %v488 = vld [vmem:[%s5 + $0x8] sm:$0xf]
  %v489 = vld [vmem:[%s5 + $0xc] sm:$0xf]
  %491 = vrot.lane.b32.xlu0 %v485, 96
  %v492 = vpop.permute.xlu0 %491
  %v497 = vunpack.c.l.b16 %v486
  %v498 = vunpack.c.l.b16 %v487
  %v499 = vunpack.c.l.b16 %v488
  %v500 = vunpack.c.l.b16 %v489
  %v501 = vpack.c.b16 %v498, %v497
  %v502 = vpack.c.b16 %v500, %v499
  %v506 = vsel %vm90, %v492, 0
  %508 = vmatpush.bf16.msra.mxu0 0
  %509 = vmatpush.bf16.msra.mxu0 0
  %510 = vmatpush.bf16.msra.mxu0 0
  %511 = vmatpush.bf16.msra.mxu0 0
  %512 = vmatpush.bf16.msra.mxu0 0
  %513 = vmatpush.bf16.msra.mxu0 0
  %514 = vmatpush.bf16.msra.mxu0 %v502
  %515 = vmatpush.bf16.msra.mxu0 %v501
  %516 = vmatmul.bf16.gmra.mxu0 %v506
  %v517 = vpop.f32.mrf.mxu0
  %v518 = vadd.f32 0.0, %v517
  %v519 = vpop.f32.mrf.mxu0
  %520 = vdwg.mxu0
  %v521 = vadd.f32 %v484, %v518
  %v522 = vxor.u32 %v521, 2147483648
  %v523 = vmul.f32 %v522, 1.442695
  %v524 = vpow.pop %v523
  %v525 = vadd.f32 %v524, 1.0
  %v526 = vrcp.pop %v525
  %v527 = vmul.f32 %v525, %v526
  %v528 = vsub.f32 1.0, %v527
  %v529 = vmul.f32 %v526, %v528
  %v530 = vadd.f32 %v526, %v529
  %vm531 = vweird.f32 %v525
  %vm532 = vweird.f32 %v526
  %vm533 = vmor %vm531, %vm532
  %v534 = vsel %vm533, %v526, %v530
  %v535 = vand.u32 2147483647, %v525
  %vm536 = vcmp.eq.f32.partialorder %v535, 8.507059e+37
  %v537 = vand.u32 %v525, 2147483648
  %v538 = vor.u32 1.1754944e-38, %v537
  %v539 = vsel %vm536, %v538, %v534
  %v540 = vmul.f32 1.0, %v539
  %v541 = vadd.f32 %v518, %v200
  %543 = vrot.lane.b32.xlu0 %v541, 64
  %v544 = vpop.permute.xlu0 %543
  %v546 = vmul.f32 %v540, %v544
  %548 = vrot.lane.b32.xlu0 %v546, 64
  %v549 = vpop.permute.xlu0 %548
  %v551 = vadd.f32 %v484, %v549
  %v552 = vtanh.pop %v551
  %v553 = vsub.f32 1.0, %v540
  %555 = vrot.lane.b32.xlu0 %v552, 96
  %v556 = vpop.permute.xlu0 %555
  %v558 = vmul.f32 %v553, %v556
  %v559 = vmul.f32 %v540, %v476
  %v560 = vadd.f32 %v558, %v559
  %562 = vrot.lane.b32.xlu0 %v560, 96
  %v563 = vpop.permute.xlu0 %562
  %s565 = scalar_lea.vmem [#allocation3], 32
  %566 = vst.msk [vmem:[%s565] sm:$0xff] %vm90, %v563
  %s567 = scalar_lea.vmem [#allocation4], 40
  %v568 = vld [vmem:[%s567] sm:$0xff]
  %v569 = vpack.c.bf16 %v560, %v560
  %v570 = vld [vmem:[%s5] sm:$0xf]
  %v571 = vld [vmem:[%s5 + $0x4] sm:$0xf]
  %v572 = vld [vmem:[%s5 + $0x8] sm:$0xf]
  %v573 = vld [vmem:[%s5 + $0xc] sm:$0xf]
  %575 = vrot.lane.b32.xlu0 %v569, 96
  %v576 = vpop.permute.xlu0 %575
  %v581 = vunpack.c.l.b16 %v570
  %v582 = vunpack.c.l.b16 %v571
  %v583 = vunpack.c.l.b16 %v572
  %v584 = vunpack.c.l.b16 %v573
  %v585 = vpack.c.b16 %v582, %v581
  %v586 = vpack.c.b16 %v584, %v583
  %v590 = vsel %vm90, %v576, 0
  %592 = vmatpush.bf16.msra.mxu0 0
  %593 = vmatpush.bf16.msra.mxu0 0
  %594 = vmatpush.bf16.msra.mxu0 0
  %595 = vmatpush.bf16.msra.mxu0 0
  %596 = vmatpush.bf16.msra.mxu0 0
  %597 = vmatpush.bf16.msra.mxu0 0
  %598 = vmatpush.bf16.msra.mxu0 %v586
  %599 = vmatpush.bf16.msra.mxu0 %v585
  %600 = vmatmul.bf16.gmra.mxu0 %v590
  %v601 = vpop.f32.mrf.mxu0
  %v602 = vadd.f32 0.0, %v601
  %v603 = vpop.f32.mrf.mxu0
  %604 = vdwg.mxu0
  %v605 = vadd.f32 %v568, %v602
  %v606 = vxor.u32 %v605, 2147483648
  %v607 = vmul.f32 %v606, 1.442695
  %v608 = vpow.pop %v607
  %v609 = vadd.f32 %v608, 1.0
  %v610 = vrcp.pop %v609
  %v611 = vmul.f32 %v609, %v610
  %v612 = vsub.f32 1.0, %v611
  %v613 = vmul.f32 %v610, %v612
  %v614 = vadd.f32 %v610, %v613
  %vm615 = vweird.f32 %v609
  %vm616 = vweird.f32 %v610
  %vm617 = vmor %vm615, %vm616
  %v618 = vsel %vm617, %v610, %v614
  %v619 = vand.u32 2147483647, %v609
  %vm620 = vcmp.eq.f32.partialorder %v619, 8.507059e+37
  %v621 = vand.u32 %v609, 2147483648
  %v622 = vor.u32 1.1754944e-38, %v621
  %v623 = vsel %vm620, %v622, %v618
  %v624 = vmul.f32 1.0, %v623
  %v625 = vadd.f32 %v602, %v200
  %627 = vrot.lane.b32.xlu0 %v625, 64
  %v628 = vpop.permute.xlu0 %627
  %v630 = vmul.f32 %v624, %v628
  %632 = vrot.lane.b32.xlu0 %v630, 64
  %v633 = vpop.permute.xlu0 %632
  %v635 = vadd.f32 %v568, %v633
  %v636 = vtanh.pop %v635
  %v637 = vsub.f32 1.0, %v624
  %639 = vrot.lane.b32.xlu0 %v636, 96
  %v640 = vpop.permute.xlu0 %639
  %v642 = vmul.f32 %v637, %v640
  %v643 = vmul.f32 %v624, %v560
  %v644 = vadd.f32 %v642, %v643
  %646 = vrot.lane.b32.xlu0 %v644, 96
  %v647 = vpop.permute.xlu0 %646
  %s649 = scalar_lea.vmem [#allocation3], 40
  %650 = vst.msk [vmem:[%s649] sm:$0xff] %vm90, %v647
  %s651 = scalar_lea.vmem [#allocation4], 48
  %v652 = vld [vmem:[%s651] sm:$0xff]
  %v653 = vpack.c.bf16 %v644, %v644
  %v654 = vld [vmem:[%s5] sm:$0xf]
  %v655 = vld [vmem:[%s5 + $0x4] sm:$0xf]
  %v656 = vld [vmem:[%s5 + $0x8] sm:$0xf]
  %v657 = vld [vmem:[%s5 + $0xc] sm:$0xf]
  %659 = vrot.lane.b32.xlu0 %v653, 96
  %v660 = vpop.permute.xlu0 %659
  %v665 = vunpack.c.l.b16 %v654
  %v666 = vunpack.c.l.b16 %v655
  %v667 = vunpack.c.l.b16 %v656
  %v668 = vunpack.c.l.b16 %v657
  %v669 = vpack.c.b16 %v666, %v665
  %v670 = vpack.c.b16 %v668, %v667
  %v674 = vsel %vm90, %v660, 0
  %676 = vmatpush.bf16.msra.mxu0 0
  %677 = vmatpush.bf16.msra.mxu0 0
  %678 = vmatpush.bf16.msra.mxu0 0
  %679 = vmatpush.bf16.msra.mxu0 0
  %680 = vmatpush.bf16.msra.mxu0 0
  %681 = vmatpush.bf16.msra.mxu0 0
  %682 = vmatpush.bf16.msra.mxu0 %v670
  %683 = vmatpush.bf16.msra.mxu0 %v669
  %684 = vmatmul.bf16.gmra.mxu0 %v674
  %v685 = vpop.f32.mrf.mxu0
  %v686 = vadd.f32 0.0, %v685
  %v687 = vpop.f32.mrf.mxu0
  %688 = vdwg.mxu0
  %v689 = vadd.f32 %v652, %v686
  %v690 = vxor.u32 %v689, 2147483648
  %v691 = vmul.f32 %v690, 1.442695
  %v692 = vpow.pop %v691
  %v693 = vadd.f32 %v692, 1.0
  %v694 = vrcp.pop %v693
  %v695 = vmul.f32 %v693, %v694
  %v696 = vsub.f32 1.0, %v695
  %v697 = vmul.f32 %v694, %v696
  %v698 = vadd.f32 %v694, %v697
  %vm699 = vweird.f32 %v693
  %vm700 = vweird.f32 %v694
  %vm701 = vmor %vm699, %vm700
  %v702 = vsel %vm701, %v694, %v698
  %v703 = vand.u32 2147483647, %v693
  %vm704 = vcmp.eq.f32.partialorder %v703, 8.507059e+37
  %v705 = vand.u32 %v693, 2147483648
  %v706 = vor.u32 1.1754944e-38, %v705
  %v707 = vsel %vm704, %v706, %v702
  %v708 = vmul.f32 1.0, %v707
  %v709 = vadd.f32 %v686, %v200
  %711 = vrot.lane.b32.xlu0 %v709, 64
  %v712 = vpop.permute.xlu0 %711
  %v714 = vmul.f32 %v708, %v712
  %716 = vrot.lane.b32.xlu0 %v714, 64
  %v717 = vpop.permute.xlu0 %716
  %v719 = vadd.f32 %v652, %v717
  %v720 = vtanh.pop %v719
  %v721 = vsub.f32 1.0, %v708
  %723 = vrot.lane.b32.xlu0 %v720, 96
  %v724 = vpop.permute.xlu0 %723
  %v726 = vmul.f32 %v721, %v724
  %v727 = vmul.f32 %v708, %v644
  %v728 = vadd.f32 %v726, %v727
  %730 = vrot.lane.b32.xlu0 %v728, 96
  %v731 = vpop.permute.xlu0 %730
  %s733 = scalar_lea.vmem [#allocation3], 48
  %734 = vst.msk [vmem:[%s733] sm:$0xff] %vm90, %v731
  %s735 = scalar_lea.vmem [#allocation4], 56
  %v736 = vld [vmem:[%s735] sm:$0xff]
  %v737 = vpack.c.bf16 %v728, %v728
  %v738 = vld [vmem:[%s5] sm:$0xf]
  %v739 = vld [vmem:[%s5 + $0x4] sm:$0xf]
  %v740 = vld [vmem:[%s5 + $0x8] sm:$0xf]
  %v741 = vld [vmem:[%s5 + $0xc] sm:$0xf]
  %743 = vrot.lane.b32.xlu0 %v737, 96
  %v744 = vpop.permute.xlu0 %743
  %v749 = vunpack.c.l.b16 %v738
  %v750 = vunpack.c.l.b16 %v739
  %v751 = vunpack.c.l.b16 %v740
  %v752 = vunpack.c.l.b16 %v741
  %v753 = vpack.c.b16 %v750, %v749
  %v754 = vpack.c.b16 %v752, %v751
  %v758 = vsel %vm90, %v744, 0
  %760 = vmatpush.bf16.msra.mxu0 0
  %761 = vmatpush.bf16.msra.mxu0 0
  %762 = vmatpush.bf16.msra.mxu0 0
  %763 = vmatpush.bf16.msra.mxu0 0
  %764 = vmatpush.bf16.msra.mxu0 0
  %765 = vmatpush.bf16.msra.mxu0 0
  %766 = vmatpush.bf16.msra.mxu0 %v754
  %767 = vmatpush.bf16.msra.mxu0 %v753
  %768 = vmatmul.bf16.gmra.mxu0 %v758
  %v769 = vpop.f32.mrf.mxu0
  %v770 = vadd.f32 0.0, %v769
  %v771 = vpop.f32.mrf.mxu0
  %772 = vdwg.mxu0
  %v773 = vadd.f32 %v736, %v770
  %v774 = vxor.u32 %v773, 2147483648
  %v775 = vmul.f32 %v774, 1.442695
  %v776 = vpow.pop %v775
  %v777 = vadd.f32 %v776, 1.0
  %v778 = vrcp.pop %v777
  %v779 = vmul.f32 %v777, %v778
  %v780 = vsub.f32 1.0, %v779
  %v781 = vmul.f32 %v778, %v780
  %v782 = vadd.f32 %v778, %v781
  %vm783 = vweird.f32 %v777
  %vm784 = vweird.f32 %v778
  %vm785 = vmor %vm783, %vm784
  %v786 = vsel %vm785, %v778, %v782
  %v787 = vand.u32 2147483647, %v777
  %vm788 = vcmp.eq.f32.partialorder %v787, 8.507059e+37
  %v789 = vand.u32 %v777, 2147483648
  %v790 = vor.u32 1.1754944e-38, %v789
  %v791 = vsel %vm788, %v790, %v786
  %v792 = vmul.f32 1.0, %v791
  %v793 = vadd.f32 %v770, %v200
  %795 = vrot.lane.b32.xlu0 %v793, 64
  %v796 = vpop.permute.xlu0 %795
  %v798 = vmul.f32 %v792, %v796
  %800 = vrot.lane.b32.xlu0 %v798, 64
  %v801 = vpop.permute.xlu0 %800
  %v803 = vadd.f32 %v736, %v801
  %v804 = vtanh.pop %v803
  %v805 = vsub.f32 1.0, %v792
  %807 = vrot.lane.b32.xlu0 %v804, 96
  %v808 = vpop.permute.xlu0 %807
  %v810 = vmul.f32 %v805, %v808
  %v811 = vmul.f32 %v792, %v728
  %v812 = vadd.f32 %v810, %v811
  %814 = vrot.lane.b32.xlu0 %v812, 96
  %v815 = vpop.permute.xlu0 %814
  %s817 = scalar_lea.vmem [#allocation3], 56
  %818 = vst.msk [vmem:[%s817] sm:$0xff] %vm90, %v815
  %819 = vst.msk [vmem:[#allocation2] sm:$0xff] %vm90, %v815
  %v820 = vld [vmem:[#allocation3] sm:$0xff]
  %v821 = vld [vmem:[#allocation3 + $0x8] sm:$0xff]
  %v822 = vld [vmem:[#allocation3 + $0x10] sm:$0xff]
  %v823 = vld [vmem:[#allocation3 + $0x18] sm:$0xff]
  %v824 = vld [vmem:[#allocation3 + $0x20] sm:$0xff]
  %v825 = vld [vmem:[#allocation3 + $0x28] sm:$0xff]
  %v826 = vld [vmem:[#allocation3 + $0x30] sm:$0xff]
  %v827 = vld [vmem:[#allocation3 + $0x38] sm:$0xff]
  %v828 = vpack.c.bf16 %v821, %v820
  %v829 = vpack.c.bf16 %v823, %v822
  %v830 = vpack.c.bf16 %v825, %v824
  %v831 = vpack.c.bf16 %v827, %v826
  %v832 = vld [vmem:[%s2] sm:$0xf]
  %v833 = vld [vmem:[%s2 + $0x4] sm:$0xf]
  %v834 = vld [vmem:[%s2 + $0x8] sm:$0xf]
  %v835 = vld [vmem:[%s2 + $0xc] sm:$0xf]
  %v836 = vld [vmem:[%s4] sm:$0x1]
  %v838 = vperm.slane %v836, 0
  %v844 = vunpack.c.l.b16 %v832
  %v845 = vunpack.c.l.b16 %v833
  %v846 = vunpack.c.l.b16 %v834
  %v847 = vunpack.c.l.b16 %v835
  %v848 = vpack.c.b16 %v845, %v844
  %v849 = vpack.c.b16 %v847, %v846
  %v853 = vsel %vm90, %v828, 0
  %v856 = vsel %vm90, %v829, 0
  %v859 = vsel %vm90, %v830, 0
  %v862 = vsel %vm90, %v831, 0
  %864 = vmatpush.bf16.msra.mxu0 0
  %865 = vmatpush.bf16.msra.mxu0 0
  %866 = vmatpush.bf16.msra.mxu0 0
  %867 = vmatpush.bf16.msra.mxu0 0
  %868 = vmatpush.bf16.msra.mxu0 0
  %869 = vmatpush.bf16.msra.mxu0 0
  %870 = vmatpush.bf16.msra.mxu0 %v849
  %871 = vmatpush.bf16.msra.mxu0 %v848
  %872 = vmatmul.bf16.gmra.mxu0 %v853
  %v873 = vpop.f32.mrf.mxu0
  %v874 = vadd.f32 %v838, %v873
  %v875 = vpop.f32.mrf.mxu0
  %v876 = vadd.f32 %v838, %v875
  %877 = vmatmul.bf16.gmra.mxu0 %v856
  %v878 = vpop.f32.mrf.mxu0
  %v879 = vadd.f32 %v838, %v878
  %v880 = vpop.f32.mrf.mxu0
  %v881 = vadd.f32 %v838, %v880
  %882 = vmatmul.bf16.gmra.mxu0 %v859
  %v883 = vpop.f32.mrf.mxu0
  %v884 = vadd.f32 %v838, %v883
  %v885 = vpop.f32.mrf.mxu0
  %v886 = vadd.f32 %v838, %v885
  %887 = vmatmul.bf16.gmra.mxu0 %v862
  %v888 = vpop.f32.mrf.mxu0
  %v889 = vadd.f32 %v838, %v888
  %v890 = vpop.f32.mrf.mxu0
  %v891 = vadd.f32 %v838, %v890
  %892 = vdwg.mxu0
  %893 = vst.msk [vmem:[#allocation4] sm:$0xff] %vm132, %v874
  %894 = vst.msk [vmem:[#allocation4 + $0x8] sm:$0xff] %vm132, %v876
  %895 = vst.msk [vmem:[#allocation4 + $0x10] sm:$0xff] %vm132, %v879
  %896 = vst.msk [vmem:[#allocation4 + $0x18] sm:$0xff] %vm132, %v881
  %897 = vst.msk [vmem:[#allocation4 + $0x20] sm:$0xff] %vm132, %v884
  %898 = vst.msk [vmem:[#allocation4 + $0x28] sm:$0xff] %vm132, %v886
  %899 = vst.msk [vmem:[#allocation4 + $0x30] sm:$0xff] %vm132, %v889
  %900 = vst.msk [vmem:[#allocation4 + $0x38] sm:$0xff] %vm132, %v891
  %v901 = vld [vmem:[%s8] sm:$0x1]
  %v903 = vperm.slane %v901, 0
  %s904 = scalar_lea.vmem [#allocation2], 8
  %v905 = vld [vmem:[%s904] sm:$0xff]
  %v906 = vld [vmem:[#allocation4] sm:$0xff]
  %v907 = vpack.c.bf16 %v905, %v905
  %v908 = vld [vmem:[%s6] sm:$0xf]
  %v909 = vld [vmem:[%s6 + $0x4] sm:$0xf]
  %v910 = vld [vmem:[%s6 + $0x8] sm:$0xf]
  %v911 = vld [vmem:[%s6 + $0xc] sm:$0xf]
  %v916 = vunpack.c.l.b16 %v908
  %v917 = vunpack.c.l.b16 %v909
  %v918 = vunpack.c.l.b16 %v910
  %v919 = vunpack.c.l.b16 %v911
  %v920 = vpack.c.b16 %v917, %v916
  %v921 = vpack.c.b16 %v919, %v918
  %v925 = vsel %vm90, %v907, 0
  %927 = vmatpush.bf16.msra.mxu0 0
  %928 = vmatpush.bf16.msra.mxu0 0
  %929 = vmatpush.bf16.msra.mxu0 0
  %930 = vmatpush.bf16.msra.mxu0 0
  %931 = vmatpush.bf16.msra.mxu0 0
  %932 = vmatpush.bf16.msra.mxu0 0
  %933 = vmatpush.bf16.msra.mxu0 %v921
  %934 = vmatpush.bf16.msra.mxu0 %v920
  %935 = vmatmul.bf16.gmra.mxu0 %v925
  %v936 = vpop.f32.mrf.mxu0
  %v937 = vadd.f32 0.0, %v936
  %v938 = vpop.f32.mrf.mxu0
  %939 = vdwg.mxu0
  %v940 = vadd.f32 %v906, %v937
  %v941 = vxor.u32 %v940, 2147483648
  %v942 = vmul.f32 %v941, 1.442695
  %v943 = vpow.pop %v942
  %v944 = vadd.f32 %v943, 1.0
  %v945 = vrcp.pop %v944
  %v946 = vmul.f32 %v944, %v945
  %v947 = vsub.f32 1.0, %v946
  %v948 = vmul.f32 %v945, %v947
  %v949 = vadd.f32 %v945, %v948
  %vm950 = vweird.f32 %v944
  %vm951 = vweird.f32 %v945
  %vm952 = vmor %vm950, %vm951
  %v953 = vsel %vm952, %v945, %v949
  %v954 = vand.u32 2147483647, %v944
  %vm955 = vcmp.eq.f32.partialorder %v954, 8.507059e+37
  %v956 = vand.u32 %v944, 2147483648
  %v957 = vor.u32 1.1754944e-38, %v956
  %v958 = vsel %vm955, %v957, %v953
  %v959 = vmul.f32 1.0, %v958
  %960 = vrot.lane.b32.xlu0 %v903, 64
  %v961 = vpop.permute.xlu0 %960
  %v963 = vadd.f32 %v937, %v961
  %965 = vrot.lane.b32.xlu0 %v963, 64
  %v966 = vpop.permute.xlu0 %965
  %v968 = vmul.f32 %v959, %v966
  %970 = vrot.lane.b32.xlu0 %v968, 64
  %v971 = vpop.permute.xlu0 %970
  %v973 = vadd.f32 %v906, %v971
  %v974 = vtanh.pop %v973
  %v975 = vsub.f32 1.0, %v959
  %977 = vrot.lane.b32.xlu0 %v974, 96
  %v978 = vpop.permute.xlu0 %977
  %v980 = vmul.f32 %v975, %v978
  %982 = vrot.lane.b32.xlu0 %v905, 32
  %v983 = vpop.permute.xlu0 %982
  %v985 = vmul.f32 %v959, %v983
  %v986 = vadd.f32 %v980, %v985
  %988 = vrot.lane.b32.xlu0 %v986, 96
  %v989 = vpop.permute.xlu0 %988
  %991 = vst.msk [vmem:[#allocation3] sm:$0xff] %vm90, %v989
  %v992 = vld [vmem:[%s231] sm:$0xff]
  %v993 = vpack.c.bf16 %v986, %v986
  %v994 = vld [vmem:[%s6] sm:$0xf]
  %v995 = vld [vmem:[%s6 + $0x4] sm:$0xf]
  %v996 = vld [vmem:[%s6 + $0x8] sm:$0xf]
  %v997 = vld [vmem:[%s6 + $0xc] sm:$0xf]
  %999 = vrot.lane.b32.xlu0 %v993, 96
  %v1000 = vpop.permute.xlu0 %999
  %v1005 = vunpack.c.l.b16 %v994
  %v1006 = vunpack.c.l.b16 %v995
  %v1007 = vunpack.c.l.b16 %v996
  %v1008 = vunpack.c.l.b16 %v997
  %v1009 = vpack.c.b16 %v1006, %v1005
  %v1010 = vpack.c.b16 %v1008, %v1007
  %v1014 = vsel %vm90, %v1000, 0
  %1016 = vmatpush.bf16.msra.mxu0 0
  %1017 = vmatpush.bf16.msra.mxu0 0
  %1018 = vmatpush.bf16.msra.mxu0 0
  %1019 = vmatpush.bf16.msra.mxu0 0
  %1020 = vmatpush.bf16.msra.mxu0 0
  %1021 = vmatpush.bf16.msra.mxu0 0
  %1022 = vmatpush.bf16.msra.mxu0 %v1010
  %1023 = vmatpush.bf16.msra.mxu0 %v1009
  %1024 = vmatmul.bf16.gmra.mxu0 %v1014
  %v1025 = vpop.f32.mrf.mxu0
  %v1026 = vadd.f32 0.0, %v1025
  %v1027 = vpop.f32.mrf.mxu0
  %1028 = vdwg.mxu0
  %v1029 = vadd.f32 %v992, %v1026
  %v1030 = vxor.u32 %v1029, 2147483648
  %v1031 = vmul.f32 %v1030, 1.442695
  %v1032 = vpow.pop %v1031
  %v1033 = vadd.f32 %v1032, 1.0
  %v1034 = vrcp.pop %v1033
  %v1035 = vmul.f32 %v1033, %v1034
  %v1036 = vsub.f32 1.0, %v1035
  %v1037 = vmul.f32 %v1034, %v1036
  %v1038 = vadd.f32 %v1034, %v1037
  %vm1039 = vweird.f32 %v1033
  %vm1040 = vweird.f32 %v1034
  %vm1041 = vmor %vm1039, %vm1040
  %v1042 = vsel %vm1041, %v1034, %v1038
  %v1043 = vand.u32 2147483647, %v1033
  %vm1044 = vcmp.eq.f32.partialorder %v1043, 8.507059e+37
  %v1045 = vand.u32 %v1033, 2147483648
  %v1046 = vor.u32 1.1754944e-38, %v1045
  %v1047 = vsel %vm1044, %v1046, %v1042
  %v1048 = vmul.f32 1.0, %v1047
  %v1049 = vadd.f32 %v1026, %v961
  %1051 = vrot.lane.b32.xlu0 %v1049, 64
  %v1052 = vpop.permute.xlu0 %1051
  %v1054 = vmul.f32 %v1048, %v1052
  %1056 = vrot.lane.b32.xlu0 %v1054, 64
  %v1057 = vpop.permute.xlu0 %1056
  %v1059 = vadd.f32 %v992, %v1057
  %v1060 = vtanh.pop %v1059
  %v1061 = vsub.f32 1.0, %v1048
  %1063 = vrot.lane.b32.xlu0 %v1060, 96
  %v1064 = vpop.permute.xlu0 %1063
  %v1066 = vmul.f32 %v1061, %v1064
  %v1067 = vmul.f32 %v1048, %v986
  %v1068 = vadd.f32 %v1066, %v1067
  %1070 = vrot.lane.b32.xlu0 %v1068, 96
  %v1071 = vpop.permute.xlu0 %1070
  %1073 = vst.msk [vmem:[%s313] sm:$0xff] %vm90, %v1071
  %v1074 = vld [vmem:[%s315] sm:$0xff]
  %v1075 = vpack.c.bf16 %v1068, %v1068
  %v1076 = vld [vmem:[%s6] sm:$0xf]
  %v1077 = vld [vmem:[%s6 + $0x4] sm:$0xf]
  %v1078 = vld [vmem:[%s6 + $0x8] sm:$0xf]
  %v1079 = vld [vmem:[%s6 + $0xc] sm:$0xf]
  %1081 = vrot.lane.b32.xlu0 %v1075, 96
  %v1082 = vpop.permute.xlu0 %1081
  %v1087 = vunpack.c.l.b16 %v1076
  %v1088 = vunpack.c.l.b16 %v1077
  %v1089 = vunpack.c.l.b16 %v1078
  %v1090 = vunpack.c.l.b16 %v1079
  %v1091 = vpack.c.b16 %v1088, %v1087
  %v1092 = vpack.c.b16 %v1090, %v1089
  %v1096 = vsel %vm90, %v1082, 0
  %1098 = vmatpush.bf16.msra.mxu0 0
  %1099 = vmatpush.bf16.msra.mxu0 0
  %1100 = vmatpush.bf16.msra.mxu0 0
  %1101 = vmatpush.bf16.msra.mxu0 0
  %1102 = vmatpush.bf16.msra.mxu0 0
  %1103 = vmatpush.bf16.msra.mxu0 0
  %1104 = vmatpush.bf16.msra.mxu0 %v1092
  %1105 = vmatpush.bf16.msra.mxu0 %v1091
  %1106 = vmatmul.bf16.gmra.mxu0 %v1096
  %v1107 = vpop.f32.mrf.mxu0
  %v1108 = vadd.f32 0.0, %v1107
  %v1109 = vpop.f32.mrf.mxu0
  %1110 = vdwg.mxu0
  %v1111 = vadd.f32 %v1074, %v1108
  %v1112 = vxor.u32 %v1111, 2147483648
  %v1113 = vmul.f32 %v1112, 1.442695
  %v1114 = vpow.pop %v1113
  %v1115 = vadd.f32 %v1114, 1.0
  %v1116 = vrcp.pop %v1115
  %v1117 = vmul.f32 %v1115, %v1116
  %v1118 = vsub.f32 1.0, %v1117
  %v1119 = vmul.f32 %v1116, %v1118
  %v1120 = vadd.f32 %v1116, %v1119
  %vm1121 = vweird.f32 %v1115
  %vm1122 = vweird.f32 %v1116
  %vm1123 = vmor %vm1121, %vm1122
  %v1124 = vsel %vm1123, %v1116, %v1120
  %v1125 = vand.u32 2147483647, %v1115
  %vm1126 = vcmp.eq.f32.partialorder %v1125, 8.507059e+37
  %v1127 = vand.u32 %v1115, 2147483648
  %v1128 = vor.u32 1.1754944e-38, %v1127
  %v1129 = vsel %vm1126, %v1128, %v1124
  %v1130 = vmul.f32 1.0, %v1129
  %v1131 = vadd.f32 %v1108, %v961
  %1133 = vrot.lane.b32.xlu0 %v1131, 64
  %v1134 = vpop.permute.xlu0 %1133
  %v1136 = vmul.f32 %v1130, %v1134
  %1138 = vrot.lane.b32.xlu0 %v1136, 64
  %v1139 = vpop.permute.xlu0 %1138
  %v1141 = vadd.f32 %v1074, %v1139
  %v1142 = vtanh.pop %v1141
  %v1143 = vsub.f32 1.0, %v1130
  %1145 = vrot.lane.b32.xlu0 %v1142, 96
  %v1146 = vpop.permute.xlu0 %1145
  %v1148 = vmul.f32 %v1143, %v1146
  %v1149 = vmul.f32 %v1130, %v1068
  %v1150 = vadd.f32 %v1148, %v1149
  %1152 = vrot.lane.b32.xlu0 %v1150, 96
  %v1153 = vpop.permute.xlu0 %1152
  %1155 = vst.msk [vmem:[%s397] sm:$0xff] %vm90, %v1153
  %v1156 = vld [vmem:[%s399] sm:$0xff]
  %v1157 = vpack.c.bf16 %v1150, %v1150
  %v1158 = vld [vmem:[%s6] sm:$0xf]
  %v1159 = vld [vmem:[%s6 + $0x4] sm:$0xf]
  %v1160 = vld [vmem:[%s6 + $0x8] sm:$0xf]
  %v1161 = vld [vmem:[%s6 + $0xc] sm:$0xf]
  %1163 = vrot.lane.b32.xlu0 %v1157, 96
  %v1164 = vpop.permute.xlu0 %1163
  %v1169 = vunpack.c.l.b16 %v1158
  %v1170 = vunpack.c.l.b16 %v1159
  %v1171 = vunpack.c.l.b16 %v1160
  %v1172 = vunpack.c.l.b16 %v1161
  %v1173 = vpack.c.b16 %v1170, %v1169
  %v1174 = vpack.c.b16 %v1172, %v1171
  %v1178 = vsel %vm90, %v1164, 0
  %1180 = vmatpush.bf16.msra.mxu0 0
  %1181 = vmatpush.bf16.msra.mxu0 0
  %1182 = vmatpush.bf16.msra.mxu0 0
  %1183 = vmatpush.bf16.msra.mxu0 0
  %1184 = vmatpush.bf16.msra.mxu0 0
  %1185 = vmatpush.bf16.msra.mxu0 0
  %1186 = vmatpush.bf16.msra.mxu0 %v1174
  %1187 = vmatpush.bf16.msra.mxu0 %v1173
  %1188 = vmatmul.bf16.gmra.mxu0 %v1178
  %v1189 = vpop.f32.mrf.mxu0
  %v1190 = vadd.f32 0.0, %v1189
  %v1191 = vpop.f32.mrf.mxu0
  %1192 = vdwg.mxu0
  %v1193 = vadd.f32 %v1156, %v1190
  %v1194 = vxor.u32 %v1193, 2147483648
  %v1195 = vmul.f32 %v1194, 1.442695
  %v1196 = vpow.pop %v1195
  %v1197 = vadd.f32 %v1196, 1.0
  %v1198 = vrcp.pop %v1197
  %v1199 = vmul.f32 %v1197, %v1198
  %v1200 = vsub.f32 1.0, %v1199
  %v1201 = vmul.f32 %v1198, %v1200
  %v1202 = vadd.f32 %v1198, %v1201
  %vm1203 = vweird.f32 %v1197
  %vm1204 = vweird.f32 %v1198
  %vm1205 = vmor %vm1203, %vm1204
  %v1206 = vsel %vm1205, %v1198, %v1202
  %v1207 = vand.u32 2147483647, %v1197
  %vm1208 = vcmp.eq.f32.partialorder %v1207, 8.507059e+37
  %v1209 = vand.u32 %v1197, 2147483648
  %v1210 = vor.u32 1.1754944e-38, %v1209
  %v1211 = vsel %vm1208, %v1210, %v1206
  %v1212 = vmul.f32 1.0, %v1211
  %v1213 = vadd.f32 %v1190, %v961
  %1215 = vrot.lane.b32.xlu0 %v1213, 64
  %v1216 = vpop.permute.xlu0 %1215
  %v1218 = vmul.f32 %v1212, %v1216
  %1220 = vrot.lane.b32.xlu0 %v1218, 64
  %v1221 = vpop.permute.xlu0 %1220
  %v1223 = vadd.f32 %v1156, %v1221
  %v1224 = vtanh.pop %v1223
  %v1225 = vsub.f32 1.0, %v1212
  %1227 = vrot.lane.b32.xlu0 %v1224, 96
  %v1228 = vpop.permute.xlu0 %1227
  %v1230 = vmul.f32 %v1225, %v1228
  %v1231 = vmul.f32 %v1212, %v1150
  %v1232 = vadd.f32 %v1230, %v1231
  %1234 = vrot.lane.b32.xlu0 %v1232, 96
  %v1235 = vpop.permute.xlu0 %1234
  %1237 = vst.msk [vmem:[%s481] sm:$0xff] %vm90, %v1235
  %v1238 = vld [vmem:[%s483] sm:$0xff]
  %v1239 = vpack.c.bf16 %v1232, %v1232
  %v1240 = vld [vmem:[%s6] sm:$0xf]
  %v1241 = vld [vmem:[%s6 + $0x4] sm:$0xf]
  %v1242 = vld [vmem:[%s6 + $0x8] sm:$0xf]
  %v1243 = vld [vmem:[%s6 + $0xc] sm:$0xf]
  %1245 = vrot.lane.b32.xlu0 %v1239, 96
  %v1246 = vpop.permute.xlu0 %1245
  %v1251 = vunpack.c.l.b16 %v1240
  %v1252 = vunpack.c.l.b16 %v1241
  %v1253 = vunpack.c.l.b16 %v1242
  %v1254 = vunpack.c.l.b16 %v1243
  %v1255 = vpack.c.b16 %v1252, %v1251
  %v1256 = vpack.c.b16 %v1254, %v1253
  %v1260 = vsel %vm90, %v1246, 0
  %1262 = vmatpush.bf16.msra.mxu0 0
  %1263 = vmatpush.bf16.msra.mxu0 0
  %1264 = vmatpush.bf16.msra.mxu0 0
  %1265 = vmatpush.bf16.msra.mxu0 0
  %1266 = vmatpush.bf16.msra.mxu0 0
  %1267 = vmatpush.bf16.msra.mxu0 0
  %1268 = vmatpush.bf16.msra.mxu0 %v1256
  %1269 = vmatpush.bf16.msra.mxu0 %v1255
  %1270 = vmatmul.bf16.gmra.mxu0 %v1260
  %v1271 = vpop.f32.mrf.mxu0
  %v1272 = vadd.f32 0.0, %v1271
  %v1273 = vpop.f32.mrf.mxu0
  %1274 = vdwg.mxu0
  %v1275 = vadd.f32 %v1238, %v1272
  %v1276 = vxor.u32 %v1275, 2147483648
  %v1277 = vmul.f32 %v1276, 1.442695
  %v1278 = vpow.pop %v1277
  %v1279 = vadd.f32 %v1278, 1.0
  %v1280 = vrcp.pop %v1279
  %v1281 = vmul.f32 %v1279, %v1280
  %v1282 = vsub.f32 1.0, %v1281
  %v1283 = vmul.f32 %v1280, %v1282
  %v1284 = vadd.f32 %v1280, %v1283
  %vm1285 = vweird.f32 %v1279
  %vm1286 = vweird.f32 %v1280
  %vm1287 = vmor %vm1285, %vm1286
  %v1288 = vsel %vm1287, %v1280, %v1284
  %v1289 = vand.u32 2147483647, %v1279
  %vm1290 = vcmp.eq.f32.partialorder %v1289, 8.507059e+37
  %v1291 = vand.u32 %v1279, 2147483648
  %v1292 = vor.u32 1.1754944e-38, %v1291
  %v1293 = vsel %vm1290, %v1292, %v1288
  %v1294 = vmul.f32 1.0, %v1293
  %v1295 = vadd.f32 %v1272, %v961
  %1297 = vrot.lane.b32.xlu0 %v1295, 64
  %v1298 = vpop.permute.xlu0 %1297
  %v1300 = vmul.f32 %v1294, %v1298
  %1302 = vrot.lane.b32.xlu0 %v1300, 64
  %v1303 = vpop.permute.xlu0 %1302
  %v1305 = vadd.f32 %v1238, %v1303
  %v1306 = vtanh.pop %v1305
  %v1307 = vsub.f32 1.0, %v1294
  %1309 = vrot.lane.b32.xlu0 %v1306, 96
  %v1310 = vpop.permute.xlu0 %1309
  %v1312 = vmul.f32 %v1307, %v1310
  %v1313 = vmul.f32 %v1294, %v1232
  %v1314 = vadd.f32 %v1312, %v1313
  %1316 = vrot.lane.b32.xlu0 %v1314, 96
  %v1317 = vpop.permute.xlu0 %1316
  %1319 = vst.msk [vmem:[%s565] sm:$0xff] %vm90, %v1317
  %v1320 = vld [vmem:[%s567] sm:$0xff]
  %v1321 = vpack.c.bf16 %v1314, %v1314
  %v1322 = vld [vmem:[%s6] sm:$0xf]
  %v1323 = vld [vmem:[%s6 + $0x4] sm:$0xf]
  %v1324 = vld [vmem:[%s6 + $0x8] sm:$0xf]
  %v1325 = vld [vmem:[%s6 + $0xc] sm:$0xf]
  %1327 = vrot.lane.b32.xlu0 %v1321, 96
  %v1328 = vpop.permute.xlu0 %1327
  %v1333 = vunpack.c.l.b16 %v1322
  %v1334 = vunpack.c.l.b16 %v1323
  %v1335 = vunpack.c.l.b16 %v1324
  %v1336 = vunpack.c.l.b16 %v1325
  %v1337 = vpack.c.b16 %v1334, %v1333
  %v1338 = vpack.c.b16 %v1336, %v1335
  %v1342 = vsel %vm90, %v1328, 0
  %1344 = vmatpush.bf16.msra.mxu0 0
  %1345 = vmatpush.bf16.msra.mxu0 0
  %1346 = vmatpush.bf16.msra.mxu0 0
  %1347 = vmatpush.bf16.msra.mxu0 0
  %1348 = vmatpush.bf16.msra.mxu0 0
  %1349 = vmatpush.bf16.msra.mxu0 0
  %1350 = vmatpush.bf16.msra.mxu0 %v1338
  %1351 = vmatpush.bf16.msra.mxu0 %v1337
  %1352 = vmatmul.bf16.gmra.mxu0 %v1342
  %v1353 = vpop.f32.mrf.mxu0
  %v1354 = vadd.f32 0.0, %v1353
  %v1355 = vpop.f32.mrf.mxu0
  %1356 = vdwg.mxu0
  %v1357 = vadd.f32 %v1320, %v1354
  %v1358 = vxor.u32 %v1357, 2147483648
  %v1359 = vmul.f32 %v1358, 1.442695
  %v1360 = vpow.pop %v1359
  %v1361 = vadd.f32 %v1360, 1.0
  %v1362 = vrcp.pop %v1361
  %v1363 = vmul.f32 %v1361, %v1362
  %v1364 = vsub.f32 1.0, %v1363
  %v1365 = vmul.f32 %v1362, %v1364
  %v1366 = vadd.f32 %v1362, %v1365
  %vm1367 = vweird.f32 %v1361
  %vm1368 = vweird.f32 %v1362
  %vm1369 = vmor %vm1367, %vm1368
  %v1370 = vsel %vm1369, %v1362, %v1366
  %v1371 = vand.u32 2147483647, %v1361
  %vm1372 = vcmp.eq.f32.partialorder %v1371, 8.507059e+37
  %v1373 = vand.u32 %v1361, 2147483648
  %v1374 = vor.u32 1.1754944e-38, %v1373
  %v1375 = vsel %vm1372, %v1374, %v1370
  %v1376 = vmul.f32 1.0, %v1375
  %v1377 = vadd.f32 %v1354, %v961
  %1379 = vrot.lane.b32.xlu0 %v1377, 64
  %v1380 = vpop.permute.xlu0 %1379
  %v1382 = vmul.f32 %v1376, %v1380
  %1384 = vrot.lane.b32.xlu0 %v1382, 64
  %v1385 = vpop.permute.xlu0 %1384
  %v1387 = vadd.f32 %v1320, %v1385
  %v1388 = vtanh.pop %v1387
  %v1389 = vsub.f32 1.0, %v1376
  %1391 = vrot.lane.b32.xlu0 %v1388, 96
  %v1392 = vpop.permute.xlu0 %1391
  %v1394 = vmul.f32 %v1389, %v1392
  %v1395 = vmul.f32 %v1376, %v1314
  %v1396 = vadd.f32 %v1394, %v1395
  %1398 = vrot.lane.b32.xlu0 %v1396, 96
  %v1399 = vpop.permute.xlu0 %1398
  %1401 = vst.msk [vmem:[%s649] sm:$0xff] %vm90, %v1399
  %v1402 = vld [vmem:[%s651] sm:$0xff]
  %v1403 = vpack.c.bf16 %v1396, %v1396
  %v1404 = vld [vmem:[%s6] sm:$0xf]
  %v1405 = vld [vmem:[%s6 + $0x4] sm:$0xf]
  %v1406 = vld [vmem:[%s6 + $0x8] sm:$0xf]
  %v1407 = vld [vmem:[%s6 + $0xc] sm:$0xf]
  %1409 = vrot.lane.b32.xlu0 %v1403, 96
  %v1410 = vpop.permute.xlu0 %1409
  %v1415 = vunpack.c.l.b16 %v1404
  %v1416 = vunpack.c.l.b16 %v1405
  %v1417 = vunpack.c.l.b16 %v1406
  %v1418 = vunpack.c.l.b16 %v1407
  %v1419 = vpack.c.b16 %v1416, %v1415
  %v1420 = vpack.c.b16 %v1418, %v1417
  %v1424 = vsel %vm90, %v1410, 0
  %1426 = vmatpush.bf16.msra.mxu0 0
  %1427 = vmatpush.bf16.msra.mxu0 0
  %1428 = vmatpush.bf16.msra.mxu0 0
  %1429 = vmatpush.bf16.msra.mxu0 0
  %1430 = vmatpush.bf16.msra.mxu0 0
  %1431 = vmatpush.bf16.msra.mxu0 0
  %1432 = vmatpush.bf16.msra.mxu0 %v1420
  %1433 = vmatpush.bf16.msra.mxu0 %v1419
  %1434 = vmatmul.bf16.gmra.mxu0 %v1424
  %v1435 = vpop.f32.mrf.mxu0
  %v1436 = vadd.f32 0.0, %v1435
  %v1437 = vpop.f32.mrf.mxu0
  %1438 = vdwg.mxu0
  %v1439 = vadd.f32 %v1402, %v1436
  %v1440 = vxor.u32 %v1439, 2147483648
  %v1441 = vmul.f32 %v1440, 1.442695
  %v1442 = vpow.pop %v1441
  %v1443 = vadd.f32 %v1442, 1.0
  %v1444 = vrcp.pop %v1443
  %v1445 = vmul.f32 %v1443, %v1444
  %v1446 = vsub.f32 1.0, %v1445
  %v1447 = vmul.f32 %v1444, %v1446
  %v1448 = vadd.f32 %v1444, %v1447
  %vm1449 = vweird.f32 %v1443
  %vm1450 = vweird.f32 %v1444
  %vm1451 = vmor %vm1449, %vm1450
  %v1452 = vsel %vm1451, %v1444, %v1448
  %v1453 = vand.u32 2147483647, %v1443
  %vm1454 = vcmp.eq.f32.partialorder %v1453, 8.507059e+37
  %v1455 = vand.u32 %v1443, 2147483648
  %v1456 = vor.u32 1.1754944e-38, %v1455
  %v1457 = vsel %vm1454, %v1456, %v1452
  %v1458 = vmul.f32 1.0, %v1457
  %v1459 = vadd.f32 %v1436, %v961
  %1461 = vrot.lane.b32.xlu0 %v1459, 64
  %v1462 = vpop.permute.xlu0 %1461
  %v1464 = vmul.f32 %v1458, %v1462
  %1466 = vrot.lane.b32.xlu0 %v1464, 64
  %v1467 = vpop.permute.xlu0 %1466
  %v1469 = vadd.f32 %v1402, %v1467
  %v1470 = vtanh.pop %v1469
  %v1471 = vsub.f32 1.0, %v1458
  %1473 = vrot.lane.b32.xlu0 %v1470, 96
  %v1474 = vpop.permute.xlu0 %1473
  %v1476 = vmul.f32 %v1471, %v1474
  %v1477 = vmul.f32 %v1458, %v1396
  %v1478 = vadd.f32 %v1476, %v1477
  %1480 = vrot.lane.b32.xlu0 %v1478, 96
  %v1481 = vpop.permute.xlu0 %1480
  %1483 = vst.msk [vmem:[%s733] sm:$0xff] %vm90, %v1481
  %v1484 = vld [vmem:[%s735] sm:$0xff]
  %v1485 = vpack.c.bf16 %v1478, %v1478
  %v1486 = vld [vmem:[%s6] sm:$0xf]
  %v1487 = vld [vmem:[%s6 + $0x4] sm:$0xf]
  %v1488 = vld [vmem:[%s6 + $0x8] sm:$0xf]
  %v1489 = vld [vmem:[%s6 + $0xc] sm:$0xf]
  %1491 = vrot.lane.b32.xlu0 %v1485, 96
  %v1492 = vpop.permute.xlu0 %1491
  %v1497 = vunpack.c.l.b16 %v1486
  %v1498 = vunpack.c.l.b16 %v1487
  %v1499 = vunpack.c.l.b16 %v1488
  %v1500 = vunpack.c.l.b16 %v1489
  %v1501 = vpack.c.b16 %v1498, %v1497
  %v1502 = vpack.c.b16 %v1500, %v1499
  %v1506 = vsel %vm90, %v1492, 0
  %1508 = vmatpush.bf16.msra.mxu0 0
  %1509 = vmatpush.bf16.msra.mxu0 0
  %1510 = vmatpush.bf16.msra.mxu0 0
  %1511 = vmatpush.bf16.msra.mxu0 0
  %1512 = vmatpush.bf16.msra.mxu0 0
  %1513 = vmatpush.bf16.msra.mxu0 0
  %1514 = vmatpush.bf16.msra.mxu0 %v1502
  %1515 = vmatpush.bf16.msra.mxu0 %v1501
  %1516 = vmatmul.bf16.gmra.mxu0 %v1506
  %v1517 = vpop.f32.mrf.mxu0
  %v1518 = vadd.f32 0.0, %v1517
  %v1519 = vpop.f32.mrf.mxu0
  %1520 = vdwg.mxu0
  %v1521 = vadd.f32 %v1484, %v1518
  %v1522 = vxor.u32 %v1521, 2147483648
  %v1523 = vmul.f32 %v1522, 1.442695
  %v1524 = vpow.pop %v1523
  %v1525 = vadd.f32 %v1524, 1.0
  %v1526 = vrcp.pop %v1525
  %v1527 = vmul.f32 %v1525, %v1526
  %v1528 = vsub.f32 1.0, %v1527
  %v1529 = vmul.f32 %v1526, %v1528
  %v1530 = vadd.f32 %v1526, %v1529
  %vm1531 = vweird.f32 %v1525
  %vm1532 = vweird.f32 %v1526
  %vm1533 = vmor %vm1531, %vm1532
  %v1534 = vsel %vm1533, %v1526, %v1530
  %v1535 = vand.u32 2147483647, %v1525
  %vm1536 = vcmp.eq.f32.partialorder %v1535, 8.507059e+37
  %v1537 = vand.u32 %v1525, 2147483648
  %v1538 = vor.u32 1.1754944e-38, %v1537
  %v1539 = vsel %vm1536, %v1538, %v1534
  %v1540 = vmul.f32 1.0, %v1539
  %v1541 = vadd.f32 %v1518, %v961
  %1543 = vrot.lane.b32.xlu0 %v1541, 64
  %v1544 = vpop.permute.xlu0 %1543
  %v1546 = vmul.f32 %v1540, %v1544
  %1548 = vrot.lane.b32.xlu0 %v1546, 64
  %v1549 = vpop.permute.xlu0 %1548
  %v1551 = vadd.f32 %v1484, %v1549
  %v1552 = vtanh.pop %v1551
  %v1553 = vsub.f32 1.0, %v1540
  %1555 = vrot.lane.b32.xlu0 %v1552, 96
  %v1556 = vpop.permute.xlu0 %1555
  %v1558 = vmul.f32 %v1553, %v1556
  %v1559 = vmul.f32 %v1540, %v1478
  %v1560 = vadd.f32 %v1558, %v1559
  %1562 = vrot.lane.b32.xlu0 %v1560, 96
  %v1563 = vpop.permute.xlu0 %1562
  %1565 = vst.msk [vmem:[%s817] sm:$0xff] %vm90, %v1563
  %1566 = vst.msk [vmem:[%s904] sm:$0xff] %vm90, %v1563
  %v1567 = vld [vmem:[#allocation3] sm:$0xff]
  %v1568 = vld [vmem:[#allocation3 + $0x8] sm:$0xff]
  %v1569 = vld [vmem:[#allocation3 + $0x10] sm:$0xff]
  %v1570 = vld [vmem:[#allocation3 + $0x18] sm:$0xff]
  %v1571 = vld [vmem:[#allocation3 + $0x20] sm:$0xff]
  %v1572 = vld [vmem:[#allocation3 + $0x28] sm:$0xff]
  %v1573 = vld [vmem:[#allocation3 + $0x30] sm:$0xff]
  %v1574 = vld [vmem:[#allocation3 + $0x38] sm:$0xff]
  %1575 = vst.msk [vmem:[%s9] sm:$0xff] %vm90, %v1567
  %1576 = vst.msk [vmem:[%s9 + $0x8] sm:$0xff] %vm90, %v1568
  %1577 = vst.msk [vmem:[%s9 + $0x10] sm:$0xff] %vm90, %v1569
  %1578 = vst.msk [vmem:[%s9 + $0x18] sm:$0xff] %vm90, %v1570
  %1579 = vst.msk [vmem:[%s9 + $0x20] sm:$0xff] %vm90, %v1571
  %1580 = vst.msk [vmem:[%s9 + $0x28] sm:$0xff] %vm90, %v1572
  %1581 = vst.msk [vmem:[%s9 + $0x30] sm:$0xff] %vm90, %v1573
  %1582 = vst.msk [vmem:[%s9 + $0x38] sm:$0xff] %vm90, %v1574
  // Predicated region
  $region42: #{rnn_encoder_forward.1} parent=0 // pred_check
    %p1583 = pneg %p35
  $region43: #{rnn_encoder_forward.1} parent=0 // pred_check_branch
    %1585 = sbr.rel (%p1583) target = $region45
  $region44: #{rnn_encoder_forward.1} parent=0 // pred_region
    %v1586 = vld [vmem:[#allocation2] sm:$0xff]
    %v1587 = vld [vmem:[#allocation2 + $0x8] sm:$0xff]
    %1588 = vst.msk [vmem:[%s10] sm:$0xff] %vm90, %v1586
    %1589 = vst.msk [vmem:[%s10 + $0x8] sm:$0xff] %vm90, %v1587
  $region45: #{rnn_encoder_forward.1} parent=0 // pred_fallthru
    _
  // Predicated region
  $region46: #{rnn_encoder_forward.1} parent=0 // pred_check
    _
  $region47: #{rnn_encoder_forward.1} parent=0 // pred_check_branch
    %1591 = sbr.rel (0) target = $region49
  $region48: #{rnn_encoder_forward.1} parent=0 // pred_region
    _
  $region49: #{rnn_encoder_forward.1} parent=0 // pred_fallthru
    _
  // Predicated region
  $region50: #{rnn_encoder_forward.1} parent=0 // pred_check
    _
  $region51: #{rnn_encoder_forward.1} parent=0 // pred_check_branch
    %1593 = sbr.rel (0) target = $region53
  $region52: #{rnn_encoder_forward.1} parent=0 // pred_region
    _
  $region53: #{rnn_encoder_forward.1} parent=0 // pred_fallthru
    _
  // Predicated region
  $region54: #{rnn_encoder_forward.1} parent=0 // pred_check
    _
  $region55: #{rnn_encoder_forward.1} parent=0 // pred_check_branch
    %1595 = sbr.rel (0) target = $region57
  $region56: #{rnn_encoder_forward.1} parent=0 // pred_region
    _
  $region57: #{rnn_encoder_forward.1} parent=0 // pred_fallthru
    _
  // Predicated region
  $region58: #{rnn_encoder_forward.1} parent=0 // pred_check
    _
  $region59: #{rnn_encoder_forward.1} parent=0 // pred_check_branch
    %1597 = sbr.rel (0) target = $region61
  $region60: #{rnn_encoder_forward.1} parent=0 // pred_region
    _
  $region61: #{rnn_encoder_forward.1} parent=0 // pred_fallthru
    _

</llo_original>
